<compile_context>
chip_gen: v5e
topology: v5e:2x2
jax: 0.10.0
libtpu: 0.0.40
codegen_flags: <defaults>
</compile_context>

<pallas_src>
import math
import functools

import jax
import jax.numpy as jnp
from jax.experimental import pallas as pl
from jax.experimental.pallas import tpu as pltpu

NEG_INF = -1000000000.0


# ----------------------------------------------------------------------------
# Kernel: fused multi-head attention for a block of batch elements
# ----------------------------------------------------------------------------
def mha_kernel(q_ref, k_ref, v_ref, mask_ref,
               wq_ref, bq_ref, wk_ref, bk_ref, wv_ref, bv_ref,
               wo_ref, bo_ref,
               o_ref, *, h, compute_dtype):
    Bblk, Sq, d = q_ref.shape
    Sk = k_ref.shape[1]
    cd = compute_dtype

    # Flatten (Bblk, S) into the matmul M dimension (bigger M per MXU op).
    xq = q_ref[...].reshape(Bblk * Sq, d).astype(cd)
    xk = k_ref[...].reshape(Bblk * Sk, d).astype(cd)
    xv = v_ref[...].reshape(Bblk * Sk, d).astype(cd)

    # Hoisted out of the head loop: one VPU compare per block, reused h times.
    key_masked = mask_ref[...] == 0.0          # [Bblk, 1, Sk]; True => masked

    acc = jnp.zeros((Bblk * Sq, d), jnp.float32)

    for hh in range(h):                        # static unroll; leading-dim slices only
        # Per-head projections. 1/sqrt(d_k) is already folded into wq/bq.
        qh = jnp.dot(xq, wq_ref[hh], preferred_element_type=jnp.float32) + bq_ref[hh]
        kh = jnp.dot(xk, wk_ref[hh], preferred_element_type=jnp.float32) + bk_ref[hh]
        vh = jnp.dot(xv, wv_ref[hh], preferred_element_type=jnp.float32) + bv_ref[hh]

        qh = qh.reshape(Bblk, Sq, -1).astype(cd)     # [Bblk, Sq, d_k]
        kh = kh.reshape(Bblk, Sk, -1).astype(cd)     # [Bblk, Sk, d_k]
        vh = vh.reshape(Bblk, Sk, -1).astype(cd)     # [Bblk, Sk, d_k]

        # scores[b, q, k]: contraction over d_k, batched over b (no explicit .T).
        s = jnp.einsum('bqd,bkd->bqk', qh, kh,
                       preferred_element_type=jnp.float32)
        s = jnp.where(key_masked, NEG_INF, s)        # masked_fill; bcast over q rows

        # softmax over keys (f32); approx reciprocal runs on the EUP slot.
        m = jnp.max(s, axis=-1, keepdims=True)
        e = jnp.exp(s - m)
        p = e * pl.reciprocal(jnp.sum(e, axis=-1, keepdims=True), approx=True)
        # TODO(synk): dropout(p) omitted (inference mode).

        # context[b, q, d_k]
        ctx = jnp.einsum('bqk,bkd->bqd', p.astype(cd), vh,
                         preferred_element_type=jnp.float32)

        # Fold the output projection into the head loop (no concatenate):
        # acc += ctx_h @ Wo[h]   with Wo pre-reshaped to [h, d_k, d].
        acc = acc + jnp.dot(ctx.reshape(Bblk * Sq, -1).astype(cd), wo_ref[hh],
                            preferred_element_type=jnp.float32)

    out = acc + bo_ref[...]
    o_ref[...] = out.reshape(Bblk, Sq, d).astype(o_ref.dtype)


# ----------------------------------------------------------------------------
# Wrapper: parameter re-layout (free, wrapper-side) + pallas_call plumbing
# ----------------------------------------------------------------------------
def _full_spec(shape):
    return pl.BlockSpec(shape, lambda b: tuple(0 for _ in shape))


def multi_headed_attention(query, key, value, mask, params, h, *,
                           block_b=None, use_bf16=True):
    B, Sq, d = query.shape
    Sk = key.shape[1]
    assert d % h == 0, "d_model must be divisible by h"
    d_k = d // h

    if mask is None:
        mask = jnp.ones((B, 1, Sk), jnp.float32)
    mask = mask.astype(jnp.float32)

    # Batch block: aim for Bblk*Sq >= 256 rows of M per grid step.
    if block_b is None:
        block_b = min(B, max(1, -(-256 // Sq)))
        while B % block_b:
            block_b -= 1
    assert B % block_b == 0
    grid = (B // block_b,)

    cd = jnp.bfloat16 if use_bf16 else jnp.float32
    scale = 1.0 / math.sqrt(d_k)

    # Pre-split weights per head (leading axis) so the kernel never slices the
    # lane dimension; fold the attention scale into Wq / bq.
    wq = (params["wq"] * scale).reshape(d, h, d_k).transpose(1, 0, 2).astype(cd)
    wk = params["wk"].reshape(d, h, d_k).transpose(1, 0, 2).astype(cd)
    wv = params["wv"].reshape(d, h, d_k).transpose(1, 0, 2).astype(cd)
    wo = params["wo"].reshape(h, d_k, d).astype(cd)
    bq = (params["bq"] * scale).reshape(h, 1, d_k).astype(jnp.float32)
    bk = params["bk"].reshape(h, 1, d_k).astype(jnp.float32)
    bv = params["bv"].reshape(h, 1, d_k).astype(jnp.float32)
    bo = params["bo"].astype(jnp.float32)

    return pl.pallas_call(
        functools.partial(mha_kernel, h=h, compute_dtype=cd),
        out_shape=jax.ShapeDtypeStruct((B, Sq, d), jnp.float32),
        grid=grid,
        in_specs=[
            pl.BlockSpec((block_b, Sq, d), lambda b: (b, 0, 0)),
            pl.BlockSpec((block_b, Sk, d), lambda b: (b, 0, 0)),
            pl.BlockSpec((block_b, Sk, d), lambda b: (b, 0, 0)),
            pl.BlockSpec((block_b, 1, Sk), lambda b: (b, 0, 0)),
            _full_spec((h, d, d_k)), _full_spec((h, 1, d_k)),   # Wq, bq (scaled)
            _full_spec((h, d, d_k)), _full_spec((h, 1, d_k)),   # Wk, bk
            _full_spec((h, d, d_k)), _full_spec((h, 1, d_k)),   # Wv, bv
            _full_spec((h, d_k, d)), _full_spec((1, d)),        # Wo, bo
        ],
        out_specs=pl.BlockSpec((block_b, Sq, d), lambda b: (b, 0, 0)),
        compiler_params=pltpu.CompilerParams(
            dimension_semantics=("parallel",)),
    )(query, key, value, mask, wq, bq, wk, bk, wv, bv, wo, bo)


# ----------------------------------------------------------------------------
# Pure-JAX reference (f32) matching the PyTorch module
# ----------------------------------------------------------------------------
def ref_mha(query, key, value, mask, params, h):
    B, Sq, d = query.shape
    d_k = d // h

    def lin(x, w, b):
        return x @ w + b

    q = lin(query, params["wq"], params["bq"]).reshape(B, Sq, h, d_k).transpose(0, 2, 1, 3)
    k = lin(key,   params["wk"], params["bk"]).reshape(B, -1, h, d_k).transpose(0, 2, 1, 3)
    v = lin(value, params["wv"], params["bv"]).reshape(B, -1, h, d_k).transpose(0, 2, 1, 3)

    s = jnp.einsum("bhqd,bhkd->bhqk", q, k) / math.sqrt(d_k)
    if mask is not None:
        s = jnp.where(mask[:, None, :, :] == 0.0, NEG_INF, s)
    p = jax.nn.softmax(s, axis=-1)
    ctx = jnp.einsum("bhqk,bhkd->bhqd", p, v).transpose(0, 2, 1, 3).reshape(B, Sq, d)
    return ctx @ params["wo"] + params["bo"]


# ----------------------------------------------------------------------------
# Deterministic parameter construction (Xavier-uniform weights, small biases)
# ----------------------------------------------------------------------------
def _xavier(key, shape):
    fan_in, fan_out = shape
    limit = math.sqrt(6.0 / (fan_in + fan_out))
    return jax.random.uniform(key, shape, jnp.float32, -limit, limit)


def init_params(key, d_model):
    ks = jax.random.split(key, 8)
    return {
        "wq": _xavier(ks[0], (d_model, d_model)),
        "bq": jax.random.uniform(ks[1], (1, d_model), jnp.float32, -0.1, 0.1),
        "wk": _xavier(ks[2], (d_model, d_model)),
        "bk": jax.random.uniform(ks[3], (1, d_model), jnp.float32, -0.1, 0.1),
        "wv": _xavier(ks[4], (d_model, d_model)),
        "bv": jax.random.uniform(ks[5], (1, d_model), jnp.float32, -0.1, 0.1),
        "wo": _xavier(ks[6], (d_model, d_model)),
        "bo": jax.random.uniform(ks[7], (1, d_model), jnp.float32, -0.1, 0.1),
    }


# ----------------------------------------------------------------------------
if __name__ == "__main__":
    # Small shapes consistent with the module's forward:
    # query/key/value [B, S, d_model], mask [B, 1, S] (1 = attend, 0 = masked).
    # d_model chosen as a multiple of 128 for lane-dense layout.
    B, S, d_model, h = 2, 16, 128, 4

    key = jax.random.PRNGKey(0)
    kq, kk, kv, kp = jax.random.split(key, 4)

    q_in = jax.random.normal(kq, (B, S, d_model), jnp.float32)
    k_in = jax.random.normal(kk, (B, S, d_model), jnp.float32)
    v_in = jax.random.normal(kv, (B, S, d_model), jnp.float32)
    mask = jnp.ones((B, 1, S), jnp.float32).at[:, :, -2:].set(0.0)

    params = init_params(kp, d_model)

    out = multi_headed_attention(q_in, k_in, v_in, mask, params, h)
    out = jax.block_until_ready(out)

    ref = ref_mha(q_in, k_in, v_in, mask, params, h)

    assert out.shape == (B, S, d_model)
    assert bool(jnp.all(jnp.isfinite(out)))
    err = float(jnp.max(jnp.abs(out - ref)))
    assert err < 5e-2, f"max abs error vs reference: {err}"
    print("KERNEL_OK")
</pallas_src>

<mosaic_0001>
module attributes {stable_mosaic.version = 11 : i64} {
  func.func @mha_kernel(%arg0: i32, %arg1: memref<2x16x128xf32, #tpu.memory_space<vmem>>, %arg2: memref<2x16x128xf32, #tpu.memory_space<vmem>>, %arg3: memref<2x16x128xf32, #tpu.memory_space<vmem>>, %arg4: memref<2x1x16xf32, #tpu.memory_space<vmem>>, %arg5: memref<4x128x32xbf16, #tpu.memory_space<vmem>>, %arg6: memref<4x1x32xf32, #tpu.memory_space<vmem>>, %arg7: memref<4x128x32xbf16, #tpu.memory_space<vmem>>, %arg8: memref<4x1x32xf32, #tpu.memory_space<vmem>>, %arg9: memref<4x128x32xbf16, #tpu.memory_space<vmem>>, %arg10: memref<4x1x32xf32, #tpu.memory_space<vmem>>, %arg11: memref<4x32x128xbf16, #tpu.memory_space<vmem>>, %arg12: memref<1x128xf32, #tpu.memory_space<vmem>>, %arg13: memref<2x16x128xf32, #tpu.memory_space<vmem>>) attributes {dimension_semantics = [#tpu.dimension_semantics<parallel>], iteration_bounds = array<i64: 1>, scalar_prefetch = 0 : i64, scratch_operands = 0 : i64, tpu.core_type = #tpu.core_type<tc>, window_params = [{transform_indices = @transform_0, window_bounds = array<i64: 2, 16, 128>}, {transform_indices = @transform_1, window_bounds = array<i64: 2, 16, 128>}, {transform_indices = @transform_2, window_bounds = array<i64: 2, 16, 128>}, {transform_indices = @transform_3, window_bounds = array<i64: 2, 1, 16>}, {pipeline_mode = #tpu.pipeline_mode<synchronous>, transform_indices = @transform_4, window_bounds = array<i64: 4, 128, 32>}, {pipeline_mode = #tpu.pipeline_mode<synchronous>, transform_indices = @transform_5, window_bounds = array<i64: 4, 1, 32>}, {pipeline_mode = #tpu.pipeline_mode<synchronous>, transform_indices = @transform_6, window_bounds = array<i64: 4, 128, 32>}, {pipeline_mode = #tpu.pipeline_mode<synchronous>, transform_indices = @transform_7, window_bounds = array<i64: 4, 1, 32>}, {pipeline_mode = #tpu.pipeline_mode<synchronous>, transform_indices = @transform_8, window_bounds = array<i64: 4, 128, 32>}, {pipeline_mode = #tpu.pipeline_mode<synchronous>, transform_indices = @transform_9, window_bounds = array<i64: 4, 1, 32>}, {pipeline_mode = #tpu.pipeline_mode<synchronous>, transform_indices = @transform_10, window_bounds = array<i64: 4, 32, 128>}, {pipeline_mode = #tpu.pipeline_mode<synchronous>, transform_indices = @transform_11, window_bounds = array<i64: 1, 128>}, {transform_indices = @transform_12, window_bounds = array<i64: 2, 16, 128>}]} {
    %c0 = arith.constant 0 : index
    %c0_0 = arith.constant 0 : index
    %c0_1 = arith.constant 0 : index
    %0 = vector.load %arg1[%c0, %c0_0, %c0_1] : memref<2x16x128xf32, #tpu.memory_space<vmem>>, vector<2x16x128xf32>
    %1 = vector.shape_cast %0 : vector<2x16x128xf32> to vector<32x128xf32>
    %2 = arith.truncf %1 : vector<32x128xf32> to vector<32x128xbf16>
    %c0_2 = arith.constant 0 : index
    %c0_3 = arith.constant 0 : index
    %c0_4 = arith.constant 0 : index
    %3 = vector.load %arg2[%c0_2, %c0_3, %c0_4] : memref<2x16x128xf32, #tpu.memory_space<vmem>>, vector<2x16x128xf32>
    %4 = vector.shape_cast %3 : vector<2x16x128xf32> to vector<32x128xf32>
    %5 = arith.truncf %4 : vector<32x128xf32> to vector<32x128xbf16>
    %c0_5 = arith.constant 0 : index
    %c0_6 = arith.constant 0 : index
    %c0_7 = arith.constant 0 : index
    %6 = vector.load %arg3[%c0_5, %c0_6, %c0_7] : memref<2x16x128xf32, #tpu.memory_space<vmem>>, vector<2x16x128xf32>
    %7 = vector.shape_cast %6 : vector<2x16x128xf32> to vector<32x128xf32>
    %8 = arith.truncf %7 : vector<32x128xf32> to vector<32x128xbf16>
    %c0_8 = arith.constant 0 : index
    %c0_9 = arith.constant 0 : index
    %c0_10 = arith.constant 0 : index
    %9 = vector.load %arg4[%c0_8, %c0_9, %c0_10] : memref<2x1x16xf32, #tpu.memory_space<vmem>>, vector<2x1x16xf32>
    %cst = arith.constant 0.000000e+00 : f32
    %10 = vector.broadcast %cst : f32 to vector<2x1x16xf32>
    %11 = arith.cmpf oeq, %9, %10 : vector<2x1x16xf32>
    %cst_11 = arith.constant 0.000000e+00 : f32
    %12 = vector.broadcast %cst_11 : f32 to vector<32x128xf32>
    %c0_12 = arith.constant 0 : index
    %c0_13 = arith.constant 0 : index
    %c0_14 = arith.constant 0 : index
    %13 = vector.load %arg5[%c0_12, %c0_13, %c0_14] : memref<4x128x32xbf16, #tpu.memory_space<vmem>>, vector<1x128x32xbf16>
    %14 = vector.shape_cast %13 : vector<1x128x32xbf16> to vector<128x32xbf16>
    %cst_15 = arith.constant dense<0.000000e+00> : vector<32x32xf32>
    %15 = tpu.matmul %2, %14, %cst_15 {dimension_numbers = #tpu.dot_dimension_numbers<[1], [0], [0], [1], [0, 0, 1, 1], [], []>} : vector<32x128xbf16>, vector<128x32xbf16>, vector<32x32xf32> -> vector<32x32xf32>
    %c0_16 = arith.constant 0 : index
    %c0_17 = arith.constant 0 : index
    %c0_18 = arith.constant 0 : index
    %16 = vector.load %arg6[%c0_16, %c0_17, %c0_18] : memref<4x1x32xf32, #tpu.memory_space<vmem>>, vector<1x1x32xf32>
    %17 = vector.shape_cast %16 : vector<1x1x32xf32> to vector<1x32xf32>
    %18 = vector.broadcast %17 : vector<1x32xf32> to vector<32x32xf32>
    %19 = arith.addf %15, %18 : vector<32x32xf32>
    %c0_19 = arith.constant 0 : index
    %c0_20 = arith.constant 0 : index
    %c0_21 = arith.constant 0 : index
    %20 = vector.load %arg7[%c0_19, %c0_20, %c0_21] : memref<4x128x32xbf16, #tpu.memory_space<vmem>>, vector<1x128x32xbf16>
    %21 = vector.shape_cast %20 : vector<1x128x32xbf16> to vector<128x32xbf16>
    %cst_22 = arith.constant dense<0.000000e+00> : vector<32x32xf32>
    %22 = tpu.matmul %5, %21, %cst_22 {dimension_numbers = #tpu.dot_dimension_numbers<[1], [0], [0], [1], [0, 0, 1, 1], [], []>} : vector<32x128xbf16>, vector<128x32xbf16>, vector<32x32xf32> -> vector<32x32xf32>
    %c0_23 = arith.constant 0 : index
    %c0_24 = arith.constant 0 : index
    %c0_25 = arith.constant 0 : index
    %23 = vector.load %arg8[%c0_23, %c0_24, %c0_25] : memref<4x1x32xf32, #tpu.memory_space<vmem>>, vector<1x1x32xf32>
    %24 = vector.shape_cast %23 : vector<1x1x32xf32> to vector<1x32xf32>
    %25 = vector.broadcast %24 : vector<1x32xf32> to vector<32x32xf32>
    %26 = arith.addf %22, %25 : vector<32x32xf32>
    %c0_26 = arith.constant 0 : index
    %c0_27 = arith.constant 0 : index
    %c0_28 = arith.constant 0 : index
    %27 = vector.load %arg9[%c0_26, %c0_27, %c0_28] : memref<4x128x32xbf16, #tpu.memory_space<vmem>>, vector<1x128x32xbf16>
    %28 = vector.shape_cast %27 : vector<1x128x32xbf16> to vector<128x32xbf16>
    %cst_29 = arith.constant dense<0.000000e+00> : vector<32x32xf32>
    %29 = tpu.matmul %8, %28, %cst_29 {dimension_numbers = #tpu.dot_dimension_numbers<[1], [0], [0], [1], [0, 0, 1, 1], [], []>} : vector<32x128xbf16>, vector<128x32xbf16>, vector<32x32xf32> -> vector<32x32xf32>
    %c0_30 = arith.constant 0 : index
    %c0_31 = arith.constant 0 : index
    %c0_32 = arith.constant 0 : index
    %30 = vector.load %arg10[%c0_30, %c0_31, %c0_32] : memref<4x1x32xf32, #tpu.memory_space<vmem>>, vector<1x1x32xf32>
    %31 = vector.shape_cast %30 : vector<1x1x32xf32> to vector<1x32xf32>
    %32 = vector.broadcast %31 : vector<1x32xf32> to vector<32x32xf32>
    %33 = arith.addf %29, %32 : vector<32x32xf32>
    %34 = vector.shape_cast %19 : vector<32x32xf32> to vector<2x16x32xf32>
    %35 = arith.truncf %34 : vector<2x16x32xf32> to vector<2x16x32xbf16>
    %36 = vector.shape_cast %26 : vector<32x32xf32> to vector<2x16x32xf32>
    %37 = arith.truncf %36 : vector<2x16x32xf32> to vector<2x16x32xbf16>
    %38 = vector.shape_cast %33 : vector<32x32xf32> to vector<2x16x32xf32>
    %39 = arith.truncf %38 : vector<2x16x32xf32> to vector<2x16x32xbf16>
    "tpu.trace_start"() <{level = 10 : i32, message = "bqd,bkd->bqk"}> : () -> ()
    %cst_33 = arith.constant dense<0.000000e+00> : vector<2x16x16xf32>
    %40 = tpu.matmul %35, %37, %cst_33 {dimension_numbers = #tpu.dot_dimension_numbers<[2], [2], [1], [1], [0, 0, 0, 1, 1, 1], [0], [0]>} : vector<2x16x32xbf16>, vector<2x16x32xbf16>, vector<2x16x16xf32> -> vector<2x16x16xf32>
    %cst_34 = arith.constant -1.000000e+09 : f32
    "tpu.trace_stop"() : () -> ()
    %41 = vector.shape_cast %11 : vector<2x1x16xi1> to vector<2x1x16xi1>
    %42 = vector.broadcast %41 : vector<2x1x16xi1> to vector<2x16x16xi1>
    %43 = vector.broadcast %cst_34 : f32 to vector<2x16x16xf32>
    %44 = arith.select %42, %43, %40 : vector<2x16x16xi1>, vector<2x16x16xf32>
    %cst_35 = arith.constant dense<0xFF800000> : vector<2x16xf32>
    %45 = vector.multi_reduction <maximumf>, %44, %cst_35 [2] : vector<2x16x16xf32> to vector<2x16xf32>
    %46 = vector.shape_cast %45 : vector<2x16xf32> to vector<2x16x1xf32>
    %47 = vector.broadcast %46 : vector<2x16x1xf32> to vector<2x16x16xf32>
    %48 = arith.subf %44, %47 : vector<2x16x16xf32>
    %49 = math.exp %48 : vector<2x16x16xf32>
    %cst_36 = arith.constant dense<0.000000e+00> : vector<2x16xf32>
    %50 = vector.multi_reduction <add>, %49, %cst_36 [2] : vector<2x16x16xf32> to vector<2x16xf32>
    %51 = vector.shape_cast %50 : vector<2x16xf32> to vector<2x16x1xf32>
    %52 = tpu.reciprocal %51 {approx = true} : vector<2x16x1xf32> -> vector<2x16x1xf32>
    %53 = vector.broadcast %52 : vector<2x16x1xf32> to vector<2x16x16xf32>
    %54 = arith.mulf %49, %53 : vector<2x16x16xf32>
    %55 = arith.truncf %54 : vector<2x16x16xf32> to vector<2x16x16xbf16>
    "tpu.trace_start"() <{level = 10 : i32, message = "bqk,bkd->bqd"}> : () -> ()
    %cst_37 = arith.constant dense<0.000000e+00> : vector<2x16x32xf32>
    %56 = tpu.matmul %55, %39, %cst_37 {dimension_numbers = #tpu.dot_dimension_numbers<[2], [1], [1], [2], [0, 0, 0, 1, 1, 2], [0], [0]>} : vector<2x16x16xbf16>, vector<2x16x32xbf16>, vector<2x16x32xf32> -> vector<2x16x32xf32>
    "tpu.trace_stop"() : () -> ()
    %57 = vector.shape_cast %56 : vector<2x16x32xf32> to vector<32x32xf32>
    %58 = arith.truncf %57 : vector<32x32xf32> to vector<32x32xbf16>
    %c0_38 = arith.constant 0 : index
    %c0_39 = arith.constant 0 : index
    %c0_40 = arith.constant 0 : index
    %59 = vector.load %arg11[%c0_38, %c0_39, %c0_40] : memref<4x32x128xbf16, #tpu.memory_space<vmem>>, vector<1x32x128xbf16>
    %60 = vector.shape_cast %59 : vector<1x32x128xbf16> to vector<32x128xbf16>
    %cst_41 = arith.constant dense<0.000000e+00> : vector<32x128xf32>
    %61 = tpu.matmul %58, %60, %cst_41 {dimension_numbers = #tpu.dot_dimension_numbers<[1], [0], [0], [1], [0, 0, 1, 1], [], []>} : vector<32x32xbf16>, vector<32x128xbf16>, vector<32x128xf32> -> vector<32x128xf32>
    %62 = arith.addf %12, %61 : vector<32x128xf32>
    %c1 = arith.constant 1 : index
    %c0_42 = arith.constant 0 : index
    %c0_43 = arith.constant 0 : index
    %63 = vector.load %arg5[%c1, %c0_42, %c0_43] : memref<4x128x32xbf16, #tpu.memory_space<vmem>>, vector<1x128x32xbf16>
    %64 = vector.shape_cast %63 : vector<1x128x32xbf16> to vector<128x32xbf16>
    %cst_44 = arith.constant dense<0.000000e+00> : vector<32x32xf32>
    %65 = tpu.matmul %2, %64, %cst_44 {dimension_numbers = #tpu.dot_dimension_numbers<[1], [0], [0], [1], [0, 0, 1, 1], [], []>} : vector<32x128xbf16>, vector<128x32xbf16>, vector<32x32xf32> -> vector<32x32xf32>
    %c1_45 = arith.constant 1 : index
    %c0_46 = arith.constant 0 : index
    %c0_47 = arith.constant 0 : index
    %66 = vector.load %arg6[%c1_45, %c0_46, %c0_47] : memref<4x1x32xf32, #tpu.memory_space<vmem>>, vector<1x1x32xf32>
    %67 = vector.shape_cast %66 : vector<1x1x32xf32> to vector<1x32xf32>
    %68 = vector.broadcast %67 : vector<1x32xf32> to vector<32x32xf32>
    %69 = arith.addf %65, %68 : vector<32x32xf32>
    %c1_48 = arith.constant 1 : index
    %c0_49 = arith.constant 0 : index
    %c0_50 = arith.constant 0 : index
    %70 = vector.load %arg7[%c1_48, %c0_49, %c0_50] : memref<4x128x32xbf16, #tpu.memory_space<vmem>>, vector<1x128x32xbf16>
    %71 = vector.shape_cast %70 : vector<1x128x32xbf16> to vector<128x32xbf16>
    %cst_51 = arith.constant dense<0.000000e+00> : vector<32x32xf32>
    %72 = tpu.matmul %5, %71, %cst_51 {dimension_numbers = #tpu.dot_dimension_numbers<[1], [0], [0], [1], [0, 0, 1, 1], [], []>} : vector<32x128xbf16>, vector<128x32xbf16>, vector<32x32xf32> -> vector<32x32xf32>
    %c1_52 = arith.constant 1 : index
    %c0_53 = arith.constant 0 : index
    %c0_54 = arith.constant 0 : index
    %73 = vector.load %arg8[%c1_52, %c0_53, %c0_54] : memref<4x1x32xf32, #tpu.memory_space<vmem>>, vector<1x1x32xf32>
    %74 = vector.shape_cast %73 : vector<1x1x32xf32> to vector<1x32xf32>
    %75 = vector.broadcast %74 : vector<1x32xf32> to vector<32x32xf32>
    %76 = arith.addf %72, %75 : vector<32x32xf32>
    %c1_55 = arith.constant 1 : index
    %c0_56 = arith.constant 0 : index
    %c0_57 = arith.constant 0 : index
    %77 = vector.load %arg9[%c1_55, %c0_56, %c0_57] : memref<4x128x32xbf16, #tpu.memory_space<vmem>>, vector<1x128x32xbf16>
    %78 = vector.shape_cast %77 : vector<1x128x32xbf16> to vector<128x32xbf16>
    %cst_58 = arith.constant dense<0.000000e+00> : vector<32x32xf32>
    %79 = tpu.matmul %8, %78, %cst_58 {dimension_numbers = #tpu.dot_dimension_numbers<[1], [0], [0], [1], [0, 0, 1, 1], [], []>} : vector<32x128xbf16>, vector<128x32xbf16>, vector<32x32xf32> -> vector<32x32xf32>
    %c1_59 = arith.constant 1 : index
    %c0_60 = arith.constant 0 : index
    %c0_61 = arith.constant 0 : index
    %80 = vector.load %arg10[%c1_59, %c0_60, %c0_61] : memref<4x1x32xf32, #tpu.memory_space<vmem>>, vector<1x1x32xf32>
    %81 = vector.shape_cast %80 : vector<1x1x32xf32> to vector<1x32xf32>
    %82 = vector.broadcast %81 : vector<1x32xf32> to vector<32x32xf32>
    %83 = arith.addf %79, %82 : vector<32x32xf32>
    %84 = vector.shape_cast %69 : vector<32x32xf32> to vector<2x16x32xf32>
    %85 = arith.truncf %84 : vector<2x16x32xf32> to vector<2x16x32xbf16>
    %86 = vector.shape_cast %76 : vector<32x32xf32> to vector<2x16x32xf32>
    %87 = arith.truncf %86 : vector<2x16x32xf32> to vector<2x16x32xbf16>
    %88 = vector.shape_cast %83 : vector<32x32xf32> to vector<2x16x32xf32>
    %89 = arith.truncf %88 : vector<2x16x32xf32> to vector<2x16x32xbf16>
    "tpu.trace_start"() <{level = 10 : i32, message = "bqd,bkd->bqk"}> : () -> ()
    %cst_62 = arith.constant dense<0.000000e+00> : vector<2x16x16xf32>
    %90 = tpu.matmul %85, %87, %cst_62 {dimension_numbers = #tpu.dot_dimension_numbers<[2], [2], [1], [1], [0, 0, 0, 1, 1, 1], [0], [0]>} : vector<2x16x32xbf16>, vector<2x16x32xbf16>, vector<2x16x16xf32> -> vector<2x16x16xf32>
    %cst_63 = arith.constant -1.000000e+09 : f32
    "tpu.trace_stop"() : () -> ()
    %91 = vector.shape_cast %11 : vector<2x1x16xi1> to vector<2x1x16xi1>
    %92 = vector.broadcast %91 : vector<2x1x16xi1> to vector<2x16x16xi1>
    %93 = vector.broadcast %cst_63 : f32 to vector<2x16x16xf32>
    %94 = arith.select %92, %93, %90 : vector<2x16x16xi1>, vector<2x16x16xf32>
    %cst_64 = arith.constant dense<0xFF800000> : vector<2x16xf32>
    %95 = vector.multi_reduction <maximumf>, %94, %cst_64 [2] : vector<2x16x16xf32> to vector<2x16xf32>
    %96 = vector.shape_cast %95 : vector<2x16xf32> to vector<2x16x1xf32>
    %97 = vector.broadcast %96 : vector<2x16x1xf32> to vector<2x16x16xf32>
    %98 = arith.subf %94, %97 : vector<2x16x16xf32>
    %99 = math.exp %98 : vector<2x16x16xf32>
    %cst_65 = arith.constant dense<0.000000e+00> : vector<2x16xf32>
    %100 = vector.multi_reduction <add>, %99, %cst_65 [2] : vector<2x16x16xf32> to vector<2x16xf32>
    %101 = vector.shape_cast %100 : vector<2x16xf32> to vector<2x16x1xf32>
    %102 = tpu.reciprocal %101 {approx = true} : vector<2x16x1xf32> -> vector<2x16x1xf32>
    %103 = vector.broadcast %102 : vector<2x16x1xf32> to vector<2x16x16xf32>
    %104 = arith.mulf %99, %103 : vector<2x16x16xf32>
    %105 = arith.truncf %104 : vector<2x16x16xf32> to vector<2x16x16xbf16>
    "tpu.trace_start"() <{level = 10 : i32, message = "bqk,bkd->bqd"}> : () -> ()
    %cst_66 = arith.constant dense<0.000000e+00> : vector<2x16x32xf32>
    %106 = tpu.matmul %105, %89, %cst_66 {dimension_numbers = #tpu.dot_dimension_numbers<[2], [1], [1], [2], [0, 0, 0, 1, 1, 2], [0], [0]>} : vector<2x16x16xbf16>, vector<2x16x32xbf16>, vector<2x16x32xf32> -> vector<2x16x32xf32>
    "tpu.trace_stop"() : () -> ()
    %107 = vector.shape_cast %106 : vector<2x16x32xf32> to vector<32x32xf32>
    %108 = arith.truncf %107 : vector<32x32xf32> to vector<32x32xbf16>
    %c1_67 = arith.constant 1 : index
    %c0_68 = arith.constant 0 : index
    %c0_69 = arith.constant 0 : index
    %109 = vector.load %arg11[%c1_67, %c0_68, %c0_69] : memref<4x32x128xbf16, #tpu.memory_space<vmem>>, vector<1x32x128xbf16>
    %110 = vector.shape_cast %109 : vector<1x32x128xbf16> to vector<32x128xbf16>
    %cst_70 = arith.constant dense<0.000000e+00> : vector<32x128xf32>
    %111 = tpu.matmul %108, %110, %cst_70 {dimension_numbers = #tpu.dot_dimension_numbers<[1], [0], [0], [1], [0, 0, 1, 1], [], []>} : vector<32x32xbf16>, vector<32x128xbf16>, vector<32x128xf32> -> vector<32x128xf32>
    %112 = arith.addf %62, %111 : vector<32x128xf32>
    %c2 = arith.constant 2 : index
    %c0_71 = arith.constant 0 : index
    %c0_72 = arith.constant 0 : index
    %113 = vector.load %arg5[%c2, %c0_71, %c0_72] : memref<4x128x32xbf16, #tpu.memory_space<vmem>>, vector<1x128x32xbf16>
    %114 = vector.shape_cast %113 : vector<1x128x32xbf16> to vector<128x32xbf16>
    %cst_73 = arith.constant dense<0.000000e+00> : vector<32x32xf32>
    %115 = tpu.matmul %2, %114, %cst_73 {dimension_numbers = #tpu.dot_dimension_numbers<[1], [0], [0], [1], [0, 0, 1, 1], [], []>} : vector<32x128xbf16>, vector<128x32xbf16>, vector<32x32xf32> -> vector<32x32xf32>
    %c2_74 = arith.constant 2 : index
    %c0_75 = arith.constant 0 : index
    %c0_76 = arith.constant 0 : index
    %116 = vector.load %arg6[%c2_74, %c0_75, %c0_76] : memref<4x1x32xf32, #tpu.memory_space<vmem>>, vector<1x1x32xf32>
    %117 = vector.shape_cast %116 : vector<1x1x32xf32> to vector<1x32xf32>
    %118 = vector.broadcast %117 : vector<1x32xf32> to vector<32x32xf32>
    %119 = arith.addf %115, %118 : vector<32x32xf32>
    %c2_77 = arith.constant 2 : index
    %c0_78 = arith.constant 0 : index
    %c0_79 = arith.constant 0 : index
    %120 = vector.load %arg7[%c2_77, %c0_78, %c0_79] : memref<4x128x32xbf16, #tpu.memory_space<vmem>>, vector<1x128x32xbf16>
    %121 = vector.shape_cast %120 : vector<1x128x32xbf16> to vector<128x32xbf16>
    %cst_80 = arith.constant dense<0.000000e+00> : vector<32x32xf32>
    %122 = tpu.matmul %5, %121, %cst_80 {dimension_numbers = #tpu.dot_dimension_numbers<[1], [0], [0], [1], [0, 0, 1, 1], [], []>} : vector<32x128xbf16>, vector<128x32xbf16>, vector<32x32xf32> -> vector<32x32xf32>
    %c2_81 = arith.constant 2 : index
    %c0_82 = arith.constant 0 : index
    %c0_83 = arith.constant 0 : index
    %123 = vector.load %arg8[%c2_81, %c0_82, %c0_83] : memref<4x1x32xf32, #tpu.memory_space<vmem>>, vector<1x1x32xf32>
    %124 = vector.shape_cast %123 : vector<1x1x32xf32> to vector<1x32xf32>
    %125 = vector.broadcast %124 : vector<1x32xf32> to vector<32x32xf32>
    %126 = arith.addf %122, %125 : vector<32x32xf32>
    %c2_84 = arith.constant 2 : index
    %c0_85 = arith.constant 0 : index
    %c0_86 = arith.constant 0 : index
    %127 = vector.load %arg9[%c2_84, %c0_85, %c0_86] : memref<4x128x32xbf16, #tpu.memory_space<vmem>>, vector<1x128x32xbf16>
    %128 = vector.shape_cast %127 : vector<1x128x32xbf16> to vector<128x32xbf16>
    %cst_87 = arith.constant dense<0.000000e+00> : vector<32x32xf32>
    %129 = tpu.matmul %8, %128, %cst_87 {dimension_numbers = #tpu.dot_dimension_numbers<[1], [0], [0], [1], [0, 0, 1, 1], [], []>} : vector<32x128xbf16>, vector<128x32xbf16>, vector<32x32xf32> -> vector<32x32xf32>
    %c2_88 = arith.constant 2 : index
    %c0_89 = arith.constant 0 : index
    %c0_90 = arith.constant 0 : index
    %130 = vector.load %arg10[%c2_88, %c0_89, %c0_90] : memref<4x1x32xf32, #tpu.memory_space<vmem>>, vector<1x1x32xf32>
    %131 = vector.shape_cast %130 : vector<1x1x32xf32> to vector<1x32xf32>
    %132 = vector.broadcast %131 : vector<1x32xf32> to vector<32x32xf32>
    %133 = arith.addf %129, %132 : vector<32x32xf32>
    %134 = vector.shape_cast %119 : vector<32x32xf32> to vector<2x16x32xf32>
    %135 = arith.truncf %134 : vector<2x16x32xf32> to vector<2x16x32xbf16>
    %136 = vector.shape_cast %126 : vector<32x32xf32> to vector<2x16x32xf32>
    %137 = arith.truncf %136 : vector<2x16x32xf32> to vector<2x16x32xbf16>
    %138 = vector.shape_cast %133 : vector<32x32xf32> to vector<2x16x32xf32>
    %139 = arith.truncf %138 : vector<2x16x32xf32> to vector<2x16x32xbf16>
    "tpu.trace_start"() <{level = 10 : i32, message = "bqd,bkd->bqk"}> : () -> ()
    %cst_91 = arith.constant dense<0.000000e+00> : vector<2x16x16xf32>
    %140 = tpu.matmul %135, %137, %cst_91 {dimension_numbers = #tpu.dot_dimension_numbers<[2], [2], [1], [1], [0, 0, 0, 1, 1, 1], [0], [0]>} : vector<2x16x32xbf16>, vector<2x16x32xbf16>, vector<2x16x16xf32> -> vector<2x16x16xf32>
    %cst_92 = arith.constant -1.000000e+09 : f32
    "tpu.trace_stop"() : () -> ()
    %141 = vector.shape_cast %11 : vector<2x1x16xi1> to vector<2x1x16xi1>
    %142 = vector.broadcast %141 : vector<2x1x16xi1> to vector<2x16x16xi1>
    %143 = vector.broadcast %cst_92 : f32 to vector<2x16x16xf32>
    %144 = arith.select %142, %143, %140 : vector<2x16x16xi1>, vector<2x16x16xf32>
    %cst_93 = arith.constant dense<0xFF800000> : vector<2x16xf32>
    %145 = vector.multi_reduction <maximumf>, %144, %cst_93 [2] : vector<2x16x16xf32> to vector<2x16xf32>
    %146 = vector.shape_cast %145 : vector<2x16xf32> to vector<2x16x1xf32>
    %147 = vector.broadcast %146 : vector<2x16x1xf32> to vector<2x16x16xf32>
    %148 = arith.subf %144, %147 : vector<2x16x16xf32>
    %149 = math.exp %148 : vector<2x16x16xf32>
    %cst_94 = arith.constant dense<0.000000e+00> : vector<2x16xf32>
    %150 = vector.multi_reduction <add>, %149, %cst_94 [2] : vector<2x16x16xf32> to vector<2x16xf32>
    %151 = vector.shape_cast %150 : vector<2x16xf32> to vector<2x16x1xf32>
    %152 = tpu.reciprocal %151 {approx = true} : vector<2x16x1xf32> -> vector<2x16x1xf32>
    %153 = vector.broadcast %152 : vector<2x16x1xf32> to vector<2x16x16xf32>
    %154 = arith.mulf %149, %153 : vector<2x16x16xf32>
    %155 = arith.truncf %154 : vector<2x16x16xf32> to vector<2x16x16xbf16>
    "tpu.trace_start"() <{level = 10 : i32, message = "bqk,bkd->bqd"}> : () -> ()
    %cst_95 = arith.constant dense<0.000000e+00> : vector<2x16x32xf32>
    %156 = tpu.matmul %155, %139, %cst_95 {dimension_numbers = #tpu.dot_dimension_numbers<[2], [1], [1], [2], [0, 0, 0, 1, 1, 2], [0], [0]>} : vector<2x16x16xbf16>, vector<2x16x32xbf16>, vector<2x16x32xf32> -> vector<2x16x32xf32>
    "tpu.trace_stop"() : () -> ()
    %157 = vector.shape_cast %156 : vector<2x16x32xf32> to vector<32x32xf32>
    %158 = arith.truncf %157 : vector<32x32xf32> to vector<32x32xbf16>
    %c2_96 = arith.constant 2 : index
    %c0_97 = arith.constant 0 : index
    %c0_98 = arith.constant 0 : index
    %159 = vector.load %arg11[%c2_96, %c0_97, %c0_98] : memref<4x32x128xbf16, #tpu.memory_space<vmem>>, vector<1x32x128xbf16>
    %160 = vector.shape_cast %159 : vector<1x32x128xbf16> to vector<32x128xbf16>
    %cst_99 = arith.constant dense<0.000000e+00> : vector<32x128xf32>
    %161 = tpu.matmul %158, %160, %cst_99 {dimension_numbers = #tpu.dot_dimension_numbers<[1], [0], [0], [1], [0, 0, 1, 1], [], []>} : vector<32x32xbf16>, vector<32x128xbf16>, vector<32x128xf32> -> vector<32x128xf32>
    %162 = arith.addf %112, %161 : vector<32x128xf32>
    %c3 = arith.constant 3 : index
    %c0_100 = arith.constant 0 : index
    %c0_101 = arith.constant 0 : index
    %163 = vector.load %arg5[%c3, %c0_100, %c0_101] : memref<4x128x32xbf16, #tpu.memory_space<vmem>>, vector<1x128x32xbf16>
    %164 = vector.shape_cast %163 : vector<1x128x32xbf16> to vector<128x32xbf16>
    %cst_102 = arith.constant dense<0.000000e+00> : vector<32x32xf32>
    %165 = tpu.matmul %2, %164, %cst_102 {dimension_numbers = #tpu.dot_dimension_numbers<[1], [0], [0], [1], [0, 0, 1, 1], [], []>} : vector<32x128xbf16>, vector<128x32xbf16>, vector<32x32xf32> -> vector<32x32xf32>
    %c3_103 = arith.constant 3 : index
    %c0_104 = arith.constant 0 : index
    %c0_105 = arith.constant 0 : index
    %166 = vector.load %arg6[%c3_103, %c0_104, %c0_105] : memref<4x1x32xf32, #tpu.memory_space<vmem>>, vector<1x1x32xf32>
    %167 = vector.shape_cast %166 : vector<1x1x32xf32> to vector<1x32xf32>
    %168 = vector.broadcast %167 : vector<1x32xf32> to vector<32x32xf32>
    %169 = arith.addf %165, %168 : vector<32x32xf32>
    %c3_106 = arith.constant 3 : index
    %c0_107 = arith.constant 0 : index
    %c0_108 = arith.constant 0 : index
    %170 = vector.load %arg7[%c3_106, %c0_107, %c0_108] : memref<4x128x32xbf16, #tpu.memory_space<vmem>>, vector<1x128x32xbf16>
    %171 = vector.shape_cast %170 : vector<1x128x32xbf16> to vector<128x32xbf16>
    %cst_109 = arith.constant dense<0.000000e+00> : vector<32x32xf32>
    %172 = tpu.matmul %5, %171, %cst_109 {dimension_numbers = #tpu.dot_dimension_numbers<[1], [0], [0], [1], [0, 0, 1, 1], [], []>} : vector<32x128xbf16>, vector<128x32xbf16>, vector<32x32xf32> -> vector<32x32xf32>
    %c3_110 = arith.constant 3 : index
    %c0_111 = arith.constant 0 : index
    %c0_112 = arith.constant 0 : index
    %173 = vector.load %arg8[%c3_110, %c0_111, %c0_112] : memref<4x1x32xf32, #tpu.memory_space<vmem>>, vector<1x1x32xf32>
    %174 = vector.shape_cast %173 : vector<1x1x32xf32> to vector<1x32xf32>
    %175 = vector.broadcast %174 : vector<1x32xf32> to vector<32x32xf32>
    %176 = arith.addf %172, %175 : vector<32x32xf32>
    %c3_113 = arith.constant 3 : index
    %c0_114 = arith.constant 0 : index
    %c0_115 = arith.constant 0 : index
    %177 = vector.load %arg9[%c3_113, %c0_114, %c0_115] : memref<4x128x32xbf16, #tpu.memory_space<vmem>>, vector<1x128x32xbf16>
    %178 = vector.shape_cast %177 : vector<1x128x32xbf16> to vector<128x32xbf16>
    %cst_116 = arith.constant dense<0.000000e+00> : vector<32x32xf32>
    %179 = tpu.matmul %8, %178, %cst_116 {dimension_numbers = #tpu.dot_dimension_numbers<[1], [0], [0], [1], [0, 0, 1, 1], [], []>} : vector<32x128xbf16>, vector<128x32xbf16>, vector<32x32xf32> -> vector<32x32xf32>
    %c3_117 = arith.constant 3 : index
    %c0_118 = arith.constant 0 : index
    %c0_119 = arith.constant 0 : index
    %180 = vector.load %arg10[%c3_117, %c0_118, %c0_119] : memref<4x1x32xf32, #tpu.memory_space<vmem>>, vector<1x1x32xf32>
    %181 = vector.shape_cast %180 : vector<1x1x32xf32> to vector<1x32xf32>
    %182 = vector.broadcast %181 : vector<1x32xf32> to vector<32x32xf32>
    %183 = arith.addf %179, %182 : vector<32x32xf32>
    %184 = vector.shape_cast %169 : vector<32x32xf32> to vector<2x16x32xf32>
    %185 = arith.truncf %184 : vector<2x16x32xf32> to vector<2x16x32xbf16>
    %186 = vector.shape_cast %176 : vector<32x32xf32> to vector<2x16x32xf32>
    %187 = arith.truncf %186 : vector<2x16x32xf32> to vector<2x16x32xbf16>
    %188 = vector.shape_cast %183 : vector<32x32xf32> to vector<2x16x32xf32>
    %189 = arith.truncf %188 : vector<2x16x32xf32> to vector<2x16x32xbf16>
    "tpu.trace_start"() <{level = 10 : i32, message = "bqd,bkd->bqk"}> : () -> ()
    %cst_120 = arith.constant dense<0.000000e+00> : vector<2x16x16xf32>
    %190 = tpu.matmul %185, %187, %cst_120 {dimension_numbers = #tpu.dot_dimension_numbers<[2], [2], [1], [1], [0, 0, 0, 1, 1, 1], [0], [0]>} : vector<2x16x32xbf16>, vector<2x16x32xbf16>, vector<2x16x16xf32> -> vector<2x16x16xf32>
    %cst_121 = arith.constant -1.000000e+09 : f32
    "tpu.trace_stop"() : () -> ()
    %191 = vector.shape_cast %11 : vector<2x1x16xi1> to vector<2x1x16xi1>
    %192 = vector.broadcast %191 : vector<2x1x16xi1> to vector<2x16x16xi1>
    %193 = vector.broadcast %cst_121 : f32 to vector<2x16x16xf32>
    %194 = arith.select %192, %193, %190 : vector<2x16x16xi1>, vector<2x16x16xf32>
    %cst_122 = arith.constant dense<0xFF800000> : vector<2x16xf32>
    %195 = vector.multi_reduction <maximumf>, %194, %cst_122 [2] : vector<2x16x16xf32> to vector<2x16xf32>
    %196 = vector.shape_cast %195 : vector<2x16xf32> to vector<2x16x1xf32>
    %197 = vector.broadcast %196 : vector<2x16x1xf32> to vector<2x16x16xf32>
    %198 = arith.subf %194, %197 : vector<2x16x16xf32>
    %199 = math.exp %198 : vector<2x16x16xf32>
    %cst_123 = arith.constant dense<0.000000e+00> : vector<2x16xf32>
    %200 = vector.multi_reduction <add>, %199, %cst_123 [2] : vector<2x16x16xf32> to vector<2x16xf32>
    %201 = vector.shape_cast %200 : vector<2x16xf32> to vector<2x16x1xf32>
    %202 = tpu.reciprocal %201 {approx = true} : vector<2x16x1xf32> -> vector<2x16x1xf32>
    %203 = vector.broadcast %202 : vector<2x16x1xf32> to vector<2x16x16xf32>
    %204 = arith.mulf %199, %203 : vector<2x16x16xf32>
    %205 = arith.truncf %204 : vector<2x16x16xf32> to vector<2x16x16xbf16>
    "tpu.trace_start"() <{level = 10 : i32, message = "bqk,bkd->bqd"}> : () -> ()
    %cst_124 = arith.constant dense<0.000000e+00> : vector<2x16x32xf32>
    %206 = tpu.matmul %205, %189, %cst_124 {dimension_numbers = #tpu.dot_dimension_numbers<[2], [1], [1], [2], [0, 0, 0, 1, 1, 2], [0], [0]>} : vector<2x16x16xbf16>, vector<2x16x32xbf16>, vector<2x16x32xf32> -> vector<2x16x32xf32>
    "tpu.trace_stop"() : () -> ()
    %207 = vector.shape_cast %206 : vector<2x16x32xf32> to vector<32x32xf32>
    %208 = arith.truncf %207 : vector<32x32xf32> to vector<32x32xbf16>
    %c3_125 = arith.constant 3 : index
    %c0_126 = arith.constant 0 : index
    %c0_127 = arith.constant 0 : index
    %209 = vector.load %arg11[%c3_125, %c0_126, %c0_127] : memref<4x32x128xbf16, #tpu.memory_space<vmem>>, vector<1x32x128xbf16>
    %210 = vector.shape_cast %209 : vector<1x32x128xbf16> to vector<32x128xbf16>
    %cst_128 = arith.constant dense<0.000000e+00> : vector<32x128xf32>
    %211 = tpu.matmul %208, %210, %cst_128 {dimension_numbers = #tpu.dot_dimension_numbers<[1], [0], [0], [1], [0, 0, 1, 1], [], []>} : vector<32x32xbf16>, vector<32x128xbf16>, vector<32x128xf32> -> vector<32x128xf32>
    %212 = arith.addf %162, %211 : vector<32x128xf32>
    %c0_129 = arith.constant 0 : index
    %c0_130 = arith.constant 0 : index
    %213 = vector.load %arg12[%c0_129, %c0_130] : memref<1x128xf32, #tpu.memory_space<vmem>>, vector<1x128xf32>
    %214 = vector.broadcast %213 : vector<1x128xf32> to vector<32x128xf32>
    %215 = arith.addf %212, %214 : vector<32x128xf32>
    %216 = vector.shape_cast %215 : vector<32x128xf32> to vector<2x16x128xf32>
    %c0_131 = arith.constant 0 : index
    %c0_132 = arith.constant 0 : index
    %c0_133 = arith.constant 0 : index
    %217 = vector.load %arg13[%c0_131, %c0_132, %c0_133] : memref<2x16x128xf32, #tpu.memory_space<vmem>>, vector<2x16x128xf32>
    tpu.vector_store %arg13[%c0_131, %c0_132, %c0_133], %216 {strides = array<i32>} : memref<2x16x128xf32, #tpu.memory_space<vmem>>, vector<2x16x128xf32>,
    return
  }
  func.func @transform_0(%arg0: i32) -> (i32, i32, i32) {
    %c0_i32 = arith.constant 0 : i32
    %c0_i32_0 = arith.constant 0 : i32
    %c0_i32_1 = arith.constant 0 : i32
    return %arg0, %c0_i32, %c0_i32_0 : i32, i32, i32
  }
  func.func @transform_1(%arg0: i32) -> (i32, i32, i32) {
    %c0_i32 = arith.constant 0 : i32
    %c0_i32_0 = arith.constant 0 : i32
    %c0_i32_1 = arith.constant 0 : i32
    return %arg0, %c0_i32, %c0_i32_0 : i32, i32, i32
  }
  func.func @transform_2(%arg0: i32) -> (i32, i32, i32) {
    %c0_i32 = arith.constant 0 : i32
    %c0_i32_0 = arith.constant 0 : i32
    %c0_i32_1 = arith.constant 0 : i32
    return %arg0, %c0_i32, %c0_i32_0 : i32, i32, i32
  }
  func.func @transform_3(%arg0: i32) -> (i32, i32, i32) {
    %c0_i32 = arith.constant 0 : i32
    %c0_i32_0 = arith.constant 0 : i32
    %c0_i32_1 = arith.constant 0 : i32
    return %arg0, %c0_i32, %c0_i32_0 : i32, i32, i32
  }
  func.func @transform_4(%arg0: i32) -> (i32, i32, i32) {
    %c0_i32 = arith.constant 0 : i32
    %c0_i32_0 = arith.constant 0 : i32
    %c0_i32_1 = arith.constant 0 : i32
    %c0_i32_2 = arith.constant 0 : i32
    return %c0_i32, %c0_i32_0, %c0_i32_1 : i32, i32, i32
  }
  func.func @transform_5(%arg0: i32) -> (i32, i32, i32) {
    %c0_i32 = arith.constant 0 : i32
    %c0_i32_0 = arith.constant 0 : i32
    %c0_i32_1 = arith.constant 0 : i32
    %c0_i32_2 = arith.constant 0 : i32
    return %c0_i32, %c0_i32_0, %c0_i32_1 : i32, i32, i32
  }
  func.func @transform_6(%arg0: i32) -> (i32, i32, i32) {
    %c0_i32 = arith.constant 0 : i32
    %c0_i32_0 = arith.constant 0 : i32
    %c0_i32_1 = arith.constant 0 : i32
    %c0_i32_2 = arith.constant 0 : i32
    return %c0_i32, %c0_i32_0, %c0_i32_1 : i32, i32, i32
  }
  func.func @transform_7(%arg0: i32) -> (i32, i32, i32) {
    %c0_i32 = arith.constant 0 : i32
    %c0_i32_0 = arith.constant 0 : i32
    %c0_i32_1 = arith.constant 0 : i32
    %c0_i32_2 = arith.constant 0 : i32
    return %c0_i32, %c0_i32_0, %c0_i32_1 : i32, i32, i32
  }
  func.func @transform_8(%arg0: i32) -> (i32, i32, i32) {
    %c0_i32 = arith.constant 0 : i32
    %c0_i32_0 = arith.constant 0 : i32
    %c0_i32_1 = arith.constant 0 : i32
    %c0_i32_2 = arith.constant 0 : i32
    return %c0_i32, %c0_i32_0, %c0_i32_1 : i32, i32, i32
  }
  func.func @transform_9(%arg0: i32) -> (i32, i32, i32) {
    %c0_i32 = arith.constant 0 : i32
    %c0_i32_0 = arith.constant 0 : i32
    %c0_i32_1 = arith.constant 0 : i32
    %c0_i32_2 = arith.constant 0 : i32
    return %c0_i32, %c0_i32_0, %c0_i32_1 : i32, i32, i32
  }
  func.func @transform_10(%arg0: i32) -> (i32, i32, i32) {
    %c0_i32 = arith.constant 0 : i32
    %c0_i32_0 = arith.constant 0 : i32
    %c0_i32_1 = arith.constant 0 : i32
    %c0_i32_2 = arith.constant 0 : i32
    return %c0_i32, %c0_i32_0, %c0_i32_1 : i32, i32, i32
  }
  func.func @transform_11(%arg0: i32) -> (i32, i32) {
    %c0_i32 = arith.constant 0 : i32
    %c0_i32_0 = arith.constant 0 : i32
    %c0_i32_1 = arith.constant 0 : i32
    return %c0_i32, %c0_i32_0 : i32, i32
  }
  func.func @transform_12(%arg0: i32) -> (i32, i32, i32) {
    %c0_i32 = arith.constant 0 : i32
    %c0_i32_0 = arith.constant 0 : i32
    %c0_i32_1 = arith.constant 0 : i32
    return %arg0, %c0_i32, %c0_i32_0 : i32, i32, i32
  }
}

</mosaic_0001>

<llo_original>
// kernel: tpu_custom_call.1
$region0: #{tpu_custom_call.1}
  #allocation0 [shape = 'u32[]', space=smem, size = 0x4, offset = 0x4, fixed_abs, tag = 'smem constant byte address 0x4 - core index']
  #allocation1 [shape = 'u32[72,128]{1,0:T(1,128)}', space=vmem, size = 0x9000, scoped, tag = 'internal scratch']
  %s0 = inlined_call_operand.vmem [shape: f32[2,16,128], index: 0, kind: input, shape index: {}]
  %s1 = inlined_call_operand.vmem [shape: f32[2,16,128], index: 1, kind: input, shape index: {}]
  %s2 = inlined_call_operand.vmem [shape: f32[2,16,128], index: 2, kind: input, shape index: {}]
  %s3 = inlined_call_operand.vmem [shape: f32[2,1,16], index: 3, kind: input, shape index: {}]
  %s4 = inlined_call_operand.vmem [shape: bf16[4,128,32], index: 4, kind: input, shape index: {}]
  %s5 = inlined_call_operand.vmem [shape: f32[4,1,32], index: 5, kind: input, shape index: {}]
  %s6 = inlined_call_operand.vmem [shape: bf16[4,128,32], index: 6, kind: input, shape index: {}]
  %s7 = inlined_call_operand.vmem [shape: f32[4,1,32], index: 7, kind: input, shape index: {}]
  %s8 = inlined_call_operand.vmem [shape: bf16[4,128,32], index: 8, kind: input, shape index: {}]
  %s9 = inlined_call_operand.vmem [shape: f32[4,1,32], index: 9, kind: input, shape index: {}]
  %s10 = inlined_call_operand.vmem [shape: bf16[4,32,128], index: 10, kind: input, shape index: {}]
  %s11 = inlined_call_operand.vmem [shape: f32[1,128], index: 11, kind: input, shape index: {}]
  %s12 = inlined_call_operand.hbm [shape: f32[2,16,128], index: 12, kind: output, shape index: {}]
  %s13 = sld [smem:[#allocation0]]
  $region58: #{tpu_custom_call.1} parent=0
    _
  %s15 = ssub.s32 1, %s13
  %s16 = scalar_select 0, %s15, %s13
  $region1: #{tpu_custom_call.1} parent=0
    #allocation2 [shape = 'u8[16384]{0}', space=vmem, size = 0x4000, scoped, tag = 'output window, operand 0, single buffered']
    #allocation3 [shape = 's32[1]{0}', space=sflag, size = 0x4, scoped, tag = 'scoped memory for tpu_custom_call.1']
    %17 = vsyncpa [#allocation3], 0
    // Predicated region
    $region2: #{tpu_custom_call.1} parent=1 // pred_check
      _
    $region3: #{tpu_custom_call.1} parent=1 // pred_check_branch
      %19 = sbr.rel (0) target = $region5
    $region4: #{tpu_custom_call.1} parent=1 // pred_region
      _
    $region5: #{tpu_custom_call.1} parent=1 // pred_fallthru
      _
    // Predicated region
    $region6: #{tpu_custom_call.1} parent=1 // pred_check
      _
    $region7: #{tpu_custom_call.1} parent=1 // pred_check_branch
      %21 = sbr.rel (0) target = $region9
    $region8: #{tpu_custom_call.1} parent=1 // pred_region
      _
    $region9: #{tpu_custom_call.1} parent=1 // pred_fallthru
      _
    // Predicated region
    $region10: #{tpu_custom_call.1} parent=1 // pred_check
      _
    $region11: #{tpu_custom_call.1} parent=1 // pred_check_branch
      %23 = sbr.rel (0) target = $region13
    $region12: #{tpu_custom_call.1} parent=1 // pred_region
      _
    $region13: #{tpu_custom_call.1} parent=1 // pred_fallthru
      _
    // Predicated region
    $region14: #{tpu_custom_call.1} parent=1 // pred_check
      _
    $region15: #{tpu_custom_call.1} parent=1 // pred_check_branch
      %25 = sbr.rel (0) target = $region17
    $region16: #{tpu_custom_call.1} parent=1 // pred_region
      _
    $region17: #{tpu_custom_call.1} parent=1 // pred_fallthru
      _
    // Predicated region
    $region18: #{tpu_custom_call.1} parent=1 // pred_check
      _
    $region19: #{tpu_custom_call.1} parent=1 // pred_check_branch
      %27 = sbr.rel (0) target = $region21
    $region20: #{tpu_custom_call.1} parent=1 // pred_region
      _
    $region21: #{tpu_custom_call.1} parent=1 // pred_fallthru
      _
    // Predicated region
    $region22: #{tpu_custom_call.1} parent=1 // pred_check
      _
    $region23: #{tpu_custom_call.1} parent=1 // pred_check_branch
      %29 = sbr.rel (0) target = $region25
    $region24: #{tpu_custom_call.1} parent=1 // pred_region
      _
    $region25: #{tpu_custom_call.1} parent=1 // pred_fallthru
      _
    // Predicated region
    $region26: #{tpu_custom_call.1} parent=1 // pred_check
      _
    $region27: #{tpu_custom_call.1} parent=1 // pred_check_branch
      %31 = sbr.rel (0) target = $region29
    $region28: #{tpu_custom_call.1} parent=1 // pred_region
      _
    $region29: #{tpu_custom_call.1} parent=1 // pred_fallthru
      _
    // Predicated region
    $region30: #{tpu_custom_call.1} parent=1 // pred_check
      _
    $region31: #{tpu_custom_call.1} parent=1 // pred_check_branch
      %33 = sbr.rel (0) target = $region33
    $region32: #{tpu_custom_call.1} parent=1 // pred_region
      _
    $region33: #{tpu_custom_call.1} parent=1 // pred_fallthru
      _
    // Predicated region
    $region34: #{tpu_custom_call.1} parent=1 // pred_check
      _
    $region35: #{tpu_custom_call.1} parent=1 // pred_check_branch
      %35 = sbr.rel (0) target = $region37
    $region36: #{tpu_custom_call.1} parent=1 // pred_region
      _
    $region37: #{tpu_custom_call.1} parent=1 // pred_fallthru
      _
    // Predicated region
    $region38: #{tpu_custom_call.1} parent=1 // pred_check
      _
    $region39: #{tpu_custom_call.1} parent=1 // pred_check_branch
      %37 = sbr.rel (0) target = $region41
    $region40: #{tpu_custom_call.1} parent=1 // pred_region
      _
    $region41: #{tpu_custom_call.1} parent=1 // pred_fallthru
      _
    // Predicated region
    $region42: #{tpu_custom_call.1} parent=1 // pred_check
      _
    $region43: #{tpu_custom_call.1} parent=1 // pred_check_branch
      %39 = sbr.rel (0) target = $region45
    $region44: #{tpu_custom_call.1} parent=1 // pred_region
      _
    $region45: #{tpu_custom_call.1} parent=1 // pred_fallthru
      _
    // Predicated region
    $region46: #{tpu_custom_call.1} parent=1 // pred_check
      _
    $region47: #{tpu_custom_call.1} parent=1 // pred_check_branch
      %41 = sbr.rel (0) target = $region49
    $region48: #{tpu_custom_call.1} parent=1 // pred_region
      _
    $region49: #{tpu_custom_call.1} parent=1 // pred_fallthru
      _
    %v43 = vld [vmem:[%s0] sm:$0xff]
    %v44 = vld [vmem:[%s0 + $0x8] sm:$0xff]
    %v45 = vld [vmem:[%s0 + $0x10] sm:$0xff]
    %v46 = vld [vmem:[%s0 + $0x18] sm:$0xff]
    %v47 = vpack.c.bf16 %v44, %v43
    %v48 = vpack.c.bf16 %v46, %v45
    %v49 = vld [vmem:[%s1] sm:$0xff]
    %v50 = vld [vmem:[%s1 + $0x8] sm:$0xff]
    %v51 = vld [vmem:[%s1 + $0x10] sm:$0xff]
    %v52 = vld [vmem:[%s1 + $0x18] sm:$0xff]
    %v53 = vpack.c.bf16 %v50, %v49
    %v54 = vpack.c.bf16 %v52, %v51
    %v55 = vld [vmem:[%s2] sm:$0xff]
    %v56 = vld [vmem:[%s2 + $0x8] sm:$0xff]
    %v57 = vld [vmem:[%s2 + $0x10] sm:$0xff]
    %v58 = vld [vmem:[%s2 + $0x18] sm:$0xff]
    %v59 = vpack.c.bf16 %v56, %v55
    %v60 = vpack.c.bf16 %v58, %v57
    %v61 = vld [vmem:[%s3] sm:$0x1]
    %v62 = vld [vmem:[%s3 + $0x1] sm:$0x1]
    %vm63 = vcmp.eq.f32.partialorder %v61, 0.0
    %vm64 = vcmp.eq.f32.partialorder %v62, 0.0
    %v65 = vld [vmem:[%s4] sm:$0xf]
    %v66 = vld [vmem:[%s4 + $0x4] sm:$0xf]
    %v67 = vld [vmem:[%s4 + $0x8] sm:$0xf]
    %v68 = vld [vmem:[%s4 + $0xc] sm:$0xf]
    %v69 = vld [vmem:[%s4 + $0x10] sm:$0xf]
    %v70 = vld [vmem:[%s4 + $0x14] sm:$0xf]
    %v71 = vld [vmem:[%s4 + $0x18] sm:$0xf]
    %v72 = vld [vmem:[%s4 + $0x1c] sm:$0xf]
    %v73 = vld [vmem:[%s4 + $0x20] sm:$0xf]
    %v74 = vld [vmem:[%s4 + $0x24] sm:$0xf]
    %v75 = vld [vmem:[%s4 + $0x28] sm:$0xf]
    %v76 = vld [vmem:[%s4 + $0x2c] sm:$0xf]
    %v77 = vld [vmem:[%s4 + $0x30] sm:$0xf]
    %v78 = vld [vmem:[%s4 + $0x34] sm:$0xf]
    %v79 = vld [vmem:[%s4 + $0x38] sm:$0xf]
    %v80 = vld [vmem:[%s4 + $0x3c] sm:$0xf]
    %v81 = vld [vmem:[%s5] sm:$0x1]
    %v83 = vperm.slane %v81, 0
    %v101 = vunpack.c.l.b16 %v65
    %v102 = vunpack.c.l.b16 %v66
    %v103 = vunpack.c.l.b16 %v67
    %v104 = vunpack.c.l.b16 %v68
    %v105 = vunpack.c.l.b16 %v69
    %v106 = vunpack.c.l.b16 %v70
    %v107 = vunpack.c.l.b16 %v71
    %v108 = vunpack.c.l.b16 %v72
    %v109 = vunpack.c.l.b16 %v73
    %v110 = vunpack.c.l.b16 %v74
    %v111 = vunpack.c.l.b16 %v75
    %v112 = vunpack.c.l.b16 %v76
    %v113 = vunpack.c.l.b16 %v77
    %v114 = vunpack.c.l.b16 %v78
    %v115 = vunpack.c.l.b16 %v79
    %v116 = vunpack.c.l.b16 %v80
    %v117 = vpack.c.b16 %v102, %v101
    %v118 = vpack.c.b16 %v104, %v103
    %v119 = vpack.c.b16 %v106, %v105
    %v120 = vpack.c.b16 %v108, %v107
    %v121 = vpack.c.b16 %v110, %v109
    %v122 = vpack.c.b16 %v112, %v111
    %v123 = vpack.c.b16 %v114, %v113
    %v124 = vpack.c.b16 %v116, %v115
    %133 = vmatpush.bf16.msra.mxu0 %v124
    %134 = vmatpush.bf16.msra.mxu0 %v123
    %135 = vmatpush.bf16.msra.mxu0 %v122
    %136 = vmatpush.bf16.msra.mxu0 %v121
    %137 = vmatpush.bf16.msra.mxu0 %v120
    %138 = vmatpush.bf16.msra.mxu0 %v119
    %139 = vmatpush.bf16.msra.mxu0 %v118
    %140 = vmatpush.bf16.msra.mxu0 %v117
    %141 = vmatmul.bf16.gmra.mxu0 %v47
    %v142 = vpop.f32.mrf.mxu0
    %v143 = vadd.f32 %v83, %v142
    %v144 = vpop.f32.mrf.mxu0
    %v145 = vadd.f32 %v83, %v144
    %146 = vmatmul.bf16.gmra.mxu0 %v48
    %v147 = vpop.f32.mrf.mxu0
    %v148 = vadd.f32 %v83, %v147
    %v149 = vpop.f32.mrf.mxu0
    %v150 = vadd.f32 %v83, %v149
    %151 = vdwg.mxu0
    %v152 = vld [vmem:[%s6] sm:$0xf]
    %v153 = vld [vmem:[%s6 + $0x4] sm:$0xf]
    %v154 = vld [vmem:[%s6 + $0x8] sm:$0xf]
    %v155 = vld [vmem:[%s6 + $0xc] sm:$0xf]
    %v156 = vld [vmem:[%s6 + $0x10] sm:$0xf]
    %v157 = vld [vmem:[%s6 + $0x14] sm:$0xf]
    %v158 = vld [vmem:[%s6 + $0x18] sm:$0xf]
    %v159 = vld [vmem:[%s6 + $0x1c] sm:$0xf]
    %v160 = vld [vmem:[%s6 + $0x20] sm:$0xf]
    %v161 = vld [vmem:[%s6 + $0x24] sm:$0xf]
    %v162 = vld [vmem:[%s6 + $0x28] sm:$0xf]
    %v163 = vld [vmem:[%s6 + $0x2c] sm:$0xf]
    %v164 = vld [vmem:[%s6 + $0x30] sm:$0xf]
    %v165 = vld [vmem:[%s6 + $0x34] sm:$0xf]
    %v166 = vld [vmem:[%s6 + $0x38] sm:$0xf]
    %v167 = vld [vmem:[%s6 + $0x3c] sm:$0xf]
    %v168 = vld [vmem:[%s7] sm:$0x1]
    %v170 = vperm.slane %v168, 0
    %v188 = vunpack.c.l.b16 %v152
    %v189 = vunpack.c.l.b16 %v153
    %v190 = vunpack.c.l.b16 %v154
    %v191 = vunpack.c.l.b16 %v155
    %v192 = vunpack.c.l.b16 %v156
    %v193 = vunpack.c.l.b16 %v157
    %v194 = vunpack.c.l.b16 %v158
    %v195 = vunpack.c.l.b16 %v159
    %v196 = vunpack.c.l.b16 %v160
    %v197 = vunpack.c.l.b16 %v161
    %v198 = vunpack.c.l.b16 %v162
    %v199 = vunpack.c.l.b16 %v163
    %v200 = vunpack.c.l.b16 %v164
    %v201 = vunpack.c.l.b16 %v165
    %v202 = vunpack.c.l.b16 %v166
    %v203 = vunpack.c.l.b16 %v167
    %v204 = vpack.c.b16 %v189, %v188
    %v205 = vpack.c.b16 %v191, %v190
    %v206 = vpack.c.b16 %v193, %v192
    %v207 = vpack.c.b16 %v195, %v194
    %v208 = vpack.c.b16 %v197, %v196
    %v209 = vpack.c.b16 %v199, %v198
    %v210 = vpack.c.b16 %v201, %v200
    %v211 = vpack.c.b16 %v203, %v202
    %220 = vmatpush.bf16.msra.mxu0 %v211
    %221 = vmatpush.bf16.msra.mxu0 %v210
    %222 = vmatpush.bf16.msra.mxu0 %v209
    %223 = vmatpush.bf16.msra.mxu0 %v208
    %224 = vmatpush.bf16.msra.mxu0 %v207
    %225 = vmatpush.bf16.msra.mxu0 %v206
    %226 = vmatpush.bf16.msra.mxu0 %v205
    %227 = vmatpush.bf16.msra.mxu0 %v204
    %228 = vmatmul.bf16.gmra.mxu0 %v53
    %v229 = vpop.f32.mrf.mxu0
    %v230 = vadd.f32 %v170, %v229
    %v231 = vpop.f32.mrf.mxu0
    %v232 = vadd.f32 %v170, %v231
    %233 = vmatmul.bf16.gmra.mxu0 %v54
    %v234 = vpop.f32.mrf.mxu0
    %v235 = vadd.f32 %v170, %v234
    %v236 = vpop.f32.mrf.mxu0
    %v237 = vadd.f32 %v170, %v236
    %238 = vdwg.mxu0
    %v239 = vld [vmem:[%s8] sm:$0xf]
    %v240 = vld [vmem:[%s8 + $0x4] sm:$0xf]
    %v241 = vld [vmem:[%s8 + $0x8] sm:$0xf]
    %v242 = vld [vmem:[%s8 + $0xc] sm:$0xf]
    %v243 = vld [vmem:[%s8 + $0x10] sm:$0xf]
    %v244 = vld [vmem:[%s8 + $0x14] sm:$0xf]
    %v245 = vld [vmem:[%s8 + $0x18] sm:$0xf]
    %v246 = vld [vmem:[%s8 + $0x1c] sm:$0xf]
    %v247 = vld [vmem:[%s8 + $0x20] sm:$0xf]
    %v248 = vld [vmem:[%s8 + $0x24] sm:$0xf]
    %v249 = vld [vmem:[%s8 + $0x28] sm:$0xf]
    %v250 = vld [vmem:[%s8 + $0x2c] sm:$0xf]
    %v251 = vld [vmem:[%s8 + $0x30] sm:$0xf]
    %v252 = vld [vmem:[%s8 + $0x34] sm:$0xf]
    %v253 = vld [vmem:[%s8 + $0x38] sm:$0xf]
    %v254 = vld [vmem:[%s8 + $0x3c] sm:$0xf]
    %v255 = vld [vmem:[%s9] sm:$0x1]
    %v257 = vperm.slane %v255, 0
    %v275 = vunpack.c.l.b16 %v239
    %v276 = vunpack.c.l.b16 %v240
    %v277 = vunpack.c.l.b16 %v241
    %v278 = vunpack.c.l.b16 %v242
    %v279 = vunpack.c.l.b16 %v243
    %v280 = vunpack.c.l.b16 %v244
    %v281 = vunpack.c.l.b16 %v245
    %v282 = vunpack.c.l.b16 %v246
    %v283 = vunpack.c.l.b16 %v247
    %v284 = vunpack.c.l.b16 %v248
    %v285 = vunpack.c.l.b16 %v249
    %v286 = vunpack.c.l.b16 %v250
    %v287 = vunpack.c.l.b16 %v251
    %v288 = vunpack.c.l.b16 %v252
    %v289 = vunpack.c.l.b16 %v253
    %v290 = vunpack.c.l.b16 %v254
    %v291 = vpack.c.b16 %v276, %v275
    %v292 = vpack.c.b16 %v278, %v277
    %v293 = vpack.c.b16 %v280, %v279
    %v294 = vpack.c.b16 %v282, %v281
    %v295 = vpack.c.b16 %v284, %v283
    %v296 = vpack.c.b16 %v286, %v285
    %v297 = vpack.c.b16 %v288, %v287
    %v298 = vpack.c.b16 %v290, %v289
    %307 = vmatpush.bf16.msra.mxu0 %v298
    %308 = vmatpush.bf16.msra.mxu0 %v297
    %309 = vmatpush.bf16.msra.mxu0 %v296
    %310 = vmatpush.bf16.msra.mxu0 %v295
    %311 = vmatpush.bf16.msra.mxu0 %v294
    %312 = vmatpush.bf16.msra.mxu0 %v293
    %313 = vmatpush.bf16.msra.mxu0 %v292
    %314 = vmatpush.bf16.msra.mxu0 %v291
    %315 = vmatmul.bf16.gmra.mxu0 %v59
    %v316 = vpop.f32.mrf.mxu0
    %v317 = vadd.f32 %v257, %v316
    %v318 = vpop.f32.mrf.mxu0
    %v319 = vadd.f32 %v257, %v318
    %320 = vmatmul.bf16.gmra.mxu0 %v60
    %v321 = vpop.f32.mrf.mxu0
    %v322 = vadd.f32 %v257, %v321
    %v323 = vpop.f32.mrf.mxu0
    %v324 = vadd.f32 %v257, %v323
    %325 = vdwg.mxu0
    %v326 = vpack.c.bf16 %v143, %v143
    %v327 = vpack.c.bf16 %v145, %v145
    %v328 = vpack.c.bf16 %v148, %v148
    %v329 = vpack.c.bf16 %v150, %v150
    %v330 = vpack.c.bf16 %v230, %v230
    %v331 = vpack.c.bf16 %v232, %v232
    %v332 = vpack.c.bf16 %v235, %v235
    %v333 = vpack.c.bf16 %v237, %v237
    %v334 = vpack.c.bf16 %v317, %v317
    %v335 = vpack.c.bf16 %v319, %v319
    %v336 = vpack.c.bf16 %v322, %v322
    %v337 = vpack.c.bf16 %v324, %v324
    %v340 = vunpack.c.l.b16 %v326
    %v341 = vunpack.c.l.b16 %v327
    %v342 = vpack.c.b16 %v341, %v340
    %v345 = vunpack.c.l.b16 %v330
    %v346 = vunpack.c.l.b16 %v331
    %v347 = vpack.c.b16 %v346, %v345
    %vm348 = vcmask 261120
    %v350 = vsel %vm348, %v342, 0
    %v353 = vsel %vm348, %v347, 0
    %355 = vmatpush.bf16.xpose.msra.mxu0 0
    %356 = vmatpush.bf16.xpose.msra.mxu0 0
    %357 = vmatpush.bf16.xpose.msra.mxu0 0
    %358 = vmatpush.bf16.xpose.msra.mxu0 0
    %359 = vmatpush.bf16.xpose.msra.mxu0 0
    %360 = vmatpush.bf16.xpose.msra.mxu0 0
    %361 = vmatpush.bf16.xpose.msra.mxu0 0
    %362 = vmatpush.bf16.xpose.msra.mxu0 %v353
    %363 = vmatmul.bf16.gmra.mxu0 %v350
    %v364 = vpop.f32.mrf.mxu0
    %v365 = vadd.f32 0.0, %v364
    %v366 = vpop.f32.mrf.mxu0
    %v367 = vadd.f32 0.0, %v366
    %368 = vdwg.mxu0
    %v371 = vunpack.c.l.b16 %v328
    %v372 = vunpack.c.l.b16 %v329
    %v373 = vpack.c.b16 %v372, %v371
    %v376 = vunpack.c.l.b16 %v332
    %v377 = vunpack.c.l.b16 %v333
    %v378 = vpack.c.b16 %v377, %v376
    %v380 = vsel %vm348, %v373, 0
    %v383 = vsel %vm348, %v378, 0
    %385 = vmatpush.bf16.xpose.msra.mxu0 0
    %386 = vmatpush.bf16.xpose.msra.mxu0 0
    %387 = vmatpush.bf16.xpose.msra.mxu0 0
    %388 = vmatpush.bf16.xpose.msra.mxu0 0
    %389 = vmatpush.bf16.xpose.msra.mxu0 0
    %390 = vmatpush.bf16.xpose.msra.mxu0 0
    %391 = vmatpush.bf16.xpose.msra.mxu0 0
    %392 = vmatpush.bf16.xpose.msra.mxu0 %v383
    %393 = vmatmul.bf16.gmra.mxu0 %v380
    %v394 = vpop.f32.mrf.mxu0
    %v395 = vadd.f32 0.0, %v394
    %v396 = vpop.f32.mrf.mxu0
    %v397 = vadd.f32 0.0, %v396
    %398 = vdwg.mxu0
    %v399 = vsel %vm63, 1, 0
    %v400 = vsel %vm64, 1, 0
    %v401 = vperm.slane %v399, 0
    %v402 = vperm.slane %v400, 0
    %vm403 = vcmp.eq.s32.totalorder %v401, 1
    %vm404 = vcmp.eq.s32.totalorder %v402, 1
    %v405 = vsel %vm403, -1e+09, %v365
    %v406 = vsel %vm403, -1e+09, %v367
    %v407 = vsel %vm404, -1e+09, %v395
    %v408 = vsel %vm404, -1e+09, %v397
    %vm409 = vcmask 130048
    %v410 = vsel %vm409, %v405, -inf
    %411 = vmax.xlane.f32.xlu0 %v410
    %v412 = vpop.xlane.xlu0 %411
    %v413 = vsel %vm409, %v406, -inf
    %414 = vmax.xlane.f32.xlu0 %v413
    %v415 = vpop.xlane.xlu0 %414
    %v416 = vsel %vm409, %v407, -inf
    %417 = vmax.xlane.f32.xlu0 %v416
    %v418 = vpop.xlane.xlu0 %417
    %v419 = vsel %vm409, %v408, -inf
    %420 = vmax.xlane.f32.xlu0 %v419
    %v421 = vpop.xlane.xlu0 %420
    %v422 = vsub.f32 %v405, %v412
    %v423 = vsub.f32 %v406, %v415
    %v424 = vsub.f32 %v407, %v418
    %v425 = vsub.f32 %v408, %v421
    %v426 = vmul.f32 %v422, 1.442695
    %v427 = vpow.pop %v426
    %v428 = vmul.f32 %v423, 1.442695
    %v429 = vpow.pop %v428
    %v430 = vmul.f32 %v424, 1.442695
    %v431 = vpow.pop %v430
    %v432 = vmul.f32 %v425, 1.442695
    %v433 = vpow.pop %v432
    %v434 = vsel %vm409, %v427, 0.0
    %435 = vadd.xlane.f32.xlu0 %v434
    %v436 = vpop.xlane.xlu0 %435
    %v437 = vsel %vm409, %v429, 0.0
    %438 = vadd.xlane.f32.xlu0 %v437
    %v439 = vpop.xlane.xlu0 %438
    %v440 = vsel %vm409, %v431, 0.0
    %441 = vadd.xlane.f32.xlu0 %v440
    %v442 = vpop.xlane.xlu0 %441
    %v443 = vsel %vm409, %v433, 0.0
    %444 = vadd.xlane.f32.xlu0 %v443
    %v445 = vpop.xlane.xlu0 %444
    %v446 = vrcp.pop %v436
    %v447 = vrcp.pop %v439
    %v448 = vrcp.pop %v442
    %v449 = vrcp.pop %v445
    %v450 = vmul.f32 %v427, %v446
    %v451 = vmul.f32 %v429, %v447
    %v452 = vmul.f32 %v431, %v448
    %v453 = vmul.f32 %v433, %v449
    %v454 = vpack.c.bf16 %v450, %v450
    %v455 = vpack.c.bf16 %v451, %v451
    %v456 = vpack.c.bf16 %v452, %v452
    %v457 = vpack.c.bf16 %v453, %v453
    %v460 = vunpack.c.l.b16 %v454
    %v461 = vunpack.c.l.b16 %v455
    %v462 = vpack.c.b16 %v461, %v460
    %v465 = vunpack.c.l.b16 %v334
    %v466 = vunpack.c.l.b16 %v335
    %v467 = vpack.c.b16 %v466, %v465
    %v470 = vsel %vm409, %v462, 0
    %472 = vmatpush.bf16.msra.mxu0 0
    %473 = vmatpush.bf16.msra.mxu0 0
    %474 = vmatpush.bf16.msra.mxu0 0
    %475 = vmatpush.bf16.msra.mxu0 0
    %476 = vmatpush.bf16.msra.mxu0 0
    %477 = vmatpush.bf16.msra.mxu0 0
    %478 = vmatpush.bf16.msra.mxu0 0
    %479 = vmatpush.bf16.msra.mxu0 %v467
    %480 = vmatmul.bf16.gmra.mxu0 %v470
    %v481 = vpop.f32.mrf.mxu0
    %v482 = vadd.f32 0.0, %v481
    %v483 = vpop.f32.mrf.mxu0
    %v484 = vadd.f32 0.0, %v483
    %485 = vdwg.mxu0
    %v488 = vunpack.c.l.b16 %v456
    %v489 = vunpack.c.l.b16 %v457
    %v490 = vpack.c.b16 %v489, %v488
    %v493 = vunpack.c.l.b16 %v336
    %v494 = vunpack.c.l.b16 %v337
    %v495 = vpack.c.b16 %v494, %v493
    %v498 = vsel %vm409, %v490, 0
    %500 = vmatpush.bf16.msra.mxu0 0
    %501 = vmatpush.bf16.msra.mxu0 0
    %502 = vmatpush.bf16.msra.mxu0 0
    %503 = vmatpush.bf16.msra.mxu0 0
    %504 = vmatpush.bf16.msra.mxu0 0
    %505 = vmatpush.bf16.msra.mxu0 0
    %506 = vmatpush.bf16.msra.mxu0 0
    %507 = vmatpush.bf16.msra.mxu0 %v495
    %508 = vmatmul.bf16.gmra.mxu0 %v498
    %v509 = vpop.f32.mrf.mxu0
    %v510 = vadd.f32 0.0, %v509
    %v511 = vpop.f32.mrf.mxu0
    %v512 = vadd.f32 0.0, %v511
    %513 = vdwg.mxu0
    %v514 = vpack.c.bf16 %v484, %v482
    %v515 = vpack.c.bf16 %v512, %v510
    %v516 = vld [vmem:[%s10] sm:$0xf]
    %v517 = vld [vmem:[%s10 + $0x4] sm:$0xf]
    %v518 = vld [vmem:[%s10 + $0x8] sm:$0xf]
    %v519 = vld [vmem:[%s10 + $0xc] sm:$0xf]
    %s520 = scalar_lea.vmem %s4, 64
    %v521 = vld [vmem:[%s520] sm:$0xf]
    %v522 = vld [vmem:[%s520 + $0x4] sm:$0xf]
    %v523 = vld [vmem:[%s520 + $0x8] sm:$0xf]
    %v524 = vld [vmem:[%s520 + $0xc] sm:$0xf]
    %v525 = vld [vmem:[%s520 + $0x10] sm:$0xf]
    %v526 = vld [vmem:[%s520 + $0x14] sm:$0xf]
    %v527 = vld [vmem:[%s520 + $0x18] sm:$0xf]
    %v528 = vld [vmem:[%s520 + $0x1c] sm:$0xf]
    %v529 = vld [vmem:[%s520 + $0x20] sm:$0xf]
    %v530 = vld [vmem:[%s520 + $0x24] sm:$0xf]
    %v531 = vld [vmem:[%s520 + $0x28] sm:$0xf]
    %v532 = vld [vmem:[%s520 + $0x2c] sm:$0xf]
    %v533 = vld [vmem:[%s520 + $0x30] sm:$0xf]
    %v534 = vld [vmem:[%s520 + $0x34] sm:$0xf]
    %v535 = vld [vmem:[%s520 + $0x38] sm:$0xf]
    %v536 = vld [vmem:[%s520 + $0x3c] sm:$0xf]
    %s537 = scalar_lea.vmem %s5, 1
    %v538 = vld [vmem:[%s537] sm:$0x1]
    %v540 = vperm.slane %v538, 0
    %v558 = vunpack.c.l.b16 %v521
    %v559 = vunpack.c.l.b16 %v522
    %v560 = vunpack.c.l.b16 %v523
    %v561 = vunpack.c.l.b16 %v524
    %v562 = vunpack.c.l.b16 %v525
    %v563 = vunpack.c.l.b16 %v526
    %v564 = vunpack.c.l.b16 %v527
    %v565 = vunpack.c.l.b16 %v528
    %v566 = vunpack.c.l.b16 %v529
    %v567 = vunpack.c.l.b16 %v530
    %v568 = vunpack.c.l.b16 %v531
    %v569 = vunpack.c.l.b16 %v532
    %v570 = vunpack.c.l.b16 %v533
    %v571 = vunpack.c.l.b16 %v534
    %v572 = vunpack.c.l.b16 %v535
    %v573 = vunpack.c.l.b16 %v536
    %v574 = vpack.c.b16 %v559, %v558
    %v575 = vpack.c.b16 %v561, %v560
    %v576 = vpack.c.b16 %v563, %v562
    %v577 = vpack.c.b16 %v565, %v564
    %v578 = vpack.c.b16 %v567, %v566
    %v579 = vpack.c.b16 %v569, %v568
    %v580 = vpack.c.b16 %v571, %v570
    %v581 = vpack.c.b16 %v573, %v572
    %590 = vmatpush.bf16.msra.mxu0 %v581
    %591 = vmatpush.bf16.msra.mxu0 %v580
    %592 = vmatpush.bf16.msra.mxu0 %v579
    %593 = vmatpush.bf16.msra.mxu0 %v578
    %594 = vmatpush.bf16.msra.mxu0 %v577
    %595 = vmatpush.bf16.msra.mxu0 %v576
    %596 = vmatpush.bf16.msra.mxu0 %v575
    %597 = vmatpush.bf16.msra.mxu0 %v574
    %598 = vmatmul.bf16.gmra.mxu0 %v47
    %v599 = vpop.f32.mrf.mxu0
    %v600 = vadd.f32 %v540, %v599
    %v601 = vpop.f32.mrf.mxu0
    %v602 = vadd.f32 %v540, %v601
    %603 = vmatmul.bf16.gmra.mxu0 %v48
    %v604 = vpop.f32.mrf.mxu0
    %v605 = vadd.f32 %v540, %v604
    %v606 = vpop.f32.mrf.mxu0
    %v607 = vadd.f32 %v540, %v606
    %608 = vdwg.mxu0
    %s609 = scalar_lea.vmem %s6, 64
    %v610 = vld [vmem:[%s609] sm:$0xf]
    %v611 = vld [vmem:[%s609 + $0x4] sm:$0xf]
    %v612 = vld [vmem:[%s609 + $0x8] sm:$0xf]
    %v613 = vld [vmem:[%s609 + $0xc] sm:$0xf]
    %v614 = vld [vmem:[%s609 + $0x10] sm:$0xf]
    %v615 = vld [vmem:[%s609 + $0x14] sm:$0xf]
    %v616 = vld [vmem:[%s609 + $0x18] sm:$0xf]
    %v617 = vld [vmem:[%s609 + $0x1c] sm:$0xf]
    %v618 = vld [vmem:[%s609 + $0x20] sm:$0xf]
    %v619 = vld [vmem:[%s609 + $0x24] sm:$0xf]
    %v620 = vld [vmem:[%s609 + $0x28] sm:$0xf]
    %v621 = vld [vmem:[%s609 + $0x2c] sm:$0xf]
    %v622 = vld [vmem:[%s609 + $0x30] sm:$0xf]
    %v623 = vld [vmem:[%s609 + $0x34] sm:$0xf]
    %v624 = vld [vmem:[%s609 + $0x38] sm:$0xf]
    %v625 = vld [vmem:[%s609 + $0x3c] sm:$0xf]
    %s626 = scalar_lea.vmem %s7, 1
    %v627 = vld [vmem:[%s626] sm:$0x1]
    %v629 = vperm.slane %v627, 0
    %v647 = vunpack.c.l.b16 %v610
    %v648 = vunpack.c.l.b16 %v611
    %v649 = vunpack.c.l.b16 %v612
    %v650 = vunpack.c.l.b16 %v613
    %v651 = vunpack.c.l.b16 %v614
    %v652 = vunpack.c.l.b16 %v615
    %v653 = vunpack.c.l.b16 %v616
    %v654 = vunpack.c.l.b16 %v617
    %v655 = vunpack.c.l.b16 %v618
    %v656 = vunpack.c.l.b16 %v619
    %v657 = vunpack.c.l.b16 %v620
    %v658 = vunpack.c.l.b16 %v621
    %v659 = vunpack.c.l.b16 %v622
    %v660 = vunpack.c.l.b16 %v623
    %v661 = vunpack.c.l.b16 %v624
    %v662 = vunpack.c.l.b16 %v625
    %v663 = vpack.c.b16 %v648, %v647
    %v664 = vpack.c.b16 %v650, %v649
    %v665 = vpack.c.b16 %v652, %v651
    %v666 = vpack.c.b16 %v654, %v653
    %v667 = vpack.c.b16 %v656, %v655
    %v668 = vpack.c.b16 %v658, %v657
    %v669 = vpack.c.b16 %v660, %v659
    %v670 = vpack.c.b16 %v662, %v661
    %679 = vmatpush.bf16.msra.mxu0 %v670
    %680 = vmatpush.bf16.msra.mxu0 %v669
    %681 = vmatpush.bf16.msra.mxu0 %v668
    %682 = vmatpush.bf16.msra.mxu0 %v667
    %683 = vmatpush.bf16.msra.mxu0 %v666
    %684 = vmatpush.bf16.msra.mxu0 %v665
    %685 = vmatpush.bf16.msra.mxu0 %v664
    %686 = vmatpush.bf16.msra.mxu0 %v663
    %687 = vmatmul.bf16.gmra.mxu0 %v53
    %v688 = vpop.f32.mrf.mxu0
    %v689 = vadd.f32 %v629, %v688
    %v690 = vpop.f32.mrf.mxu0
    %v691 = vadd.f32 %v629, %v690
    %692 = vmatmul.bf16.gmra.mxu0 %v54
    %v693 = vpop.f32.mrf.mxu0
    %v694 = vadd.f32 %v629, %v693
    %v695 = vpop.f32.mrf.mxu0
    %v696 = vadd.f32 %v629, %v695
    %697 = vdwg.mxu0
    %s698 = scalar_lea.vmem %s8, 64
    %v699 = vld [vmem:[%s698] sm:$0xf]
    %v700 = vld [vmem:[%s698 + $0x4] sm:$0xf]
    %v701 = vld [vmem:[%s698 + $0x8] sm:$0xf]
    %v702 = vld [vmem:[%s698 + $0xc] sm:$0xf]
    %v703 = vld [vmem:[%s698 + $0x10] sm:$0xf]
    %v704 = vld [vmem:[%s698 + $0x14] sm:$0xf]
    %v705 = vld [vmem:[%s698 + $0x18] sm:$0xf]
    %v706 = vld [vmem:[%s698 + $0x1c] sm:$0xf]
    %v707 = vld [vmem:[%s698 + $0x20] sm:$0xf]
    %v708 = vld [vmem:[%s698 + $0x24] sm:$0xf]
    %v709 = vld [vmem:[%s698 + $0x28] sm:$0xf]
    %v710 = vld [vmem:[%s698 + $0x2c] sm:$0xf]
    %v711 = vld [vmem:[%s698 + $0x30] sm:$0xf]
    %v712 = vld [vmem:[%s698 + $0x34] sm:$0xf]
    %v713 = vld [vmem:[%s698 + $0x38] sm:$0xf]
    %v714 = vld [vmem:[%s698 + $0x3c] sm:$0xf]
    %s715 = scalar_lea.vmem %s9, 1
    %v716 = vld [vmem:[%s715] sm:$0x1]
    %v718 = vperm.slane %v716, 0
    %v736 = vunpack.c.l.b16 %v699
    %v737 = vunpack.c.l.b16 %v700
    %v738 = vunpack.c.l.b16 %v701
    %v739 = vunpack.c.l.b16 %v702
    %v740 = vunpack.c.l.b16 %v703
    %v741 = vunpack.c.l.b16 %v704
    %v742 = vunpack.c.l.b16 %v705
    %v743 = vunpack.c.l.b16 %v706
    %v744 = vunpack.c.l.b16 %v707
    %v745 = vunpack.c.l.b16 %v708
    %v746 = vunpack.c.l.b16 %v709
    %v747 = vunpack.c.l.b16 %v710
    %v748 = vunpack.c.l.b16 %v711
    %v749 = vunpack.c.l.b16 %v712
    %v750 = vunpack.c.l.b16 %v713
    %v751 = vunpack.c.l.b16 %v714
    %v752 = vpack.c.b16 %v737, %v736
    %v753 = vpack.c.b16 %v739, %v738
    %v754 = vpack.c.b16 %v741, %v740
    %v755 = vpack.c.b16 %v743, %v742
    %v756 = vpack.c.b16 %v745, %v744
    %v757 = vpack.c.b16 %v747, %v746
    %v758 = vpack.c.b16 %v749, %v748
    %v759 = vpack.c.b16 %v751, %v750
    %768 = vmatpush.bf16.msra.mxu0 %v759
    %769 = vmatpush.bf16.msra.mxu0 %v758
    %770 = vmatpush.bf16.msra.mxu0 %v757
    %771 = vmatpush.bf16.msra.mxu0 %v756
    %772 = vmatpush.bf16.msra.mxu0 %v755
    %773 = vmatpush.bf16.msra.mxu0 %v754
    %774 = vmatpush.bf16.msra.mxu0 %v753
    %775 = vmatpush.bf16.msra.mxu0 %v752
    %776 = vmatmul.bf16.gmra.mxu0 %v59
    %v777 = vpop.f32.mrf.mxu0
    %v778 = vadd.f32 %v718, %v777
    %v779 = vpop.f32.mrf.mxu0
    %v780 = vadd.f32 %v718, %v779
    %781 = vmatmul.bf16.gmra.mxu0 %v60
    %v782 = vpop.f32.mrf.mxu0
    %v783 = vadd.f32 %v718, %v782
    %v784 = vpop.f32.mrf.mxu0
    %v785 = vadd.f32 %v718, %v784
    %786 = vdwg.mxu0
    %v787 = vpack.c.bf16 %v600, %v600
    %v788 = vpack.c.bf16 %v602, %v602
    %v789 = vpack.c.bf16 %v605, %v605
    %v790 = vpack.c.bf16 %v607, %v607
    %v791 = vpack.c.bf16 %v689, %v689
    %v792 = vpack.c.bf16 %v691, %v691
    %v793 = vpack.c.bf16 %v694, %v694
    %v794 = vpack.c.bf16 %v696, %v696
    %v795 = vpack.c.bf16 %v778, %v778
    %v796 = vpack.c.bf16 %v780, %v780
    %v797 = vpack.c.bf16 %v783, %v783
    %v798 = vpack.c.bf16 %v785, %v785
    %v801 = vunpack.c.l.b16 %v787
    %v802 = vunpack.c.l.b16 %v788
    %v803 = vpack.c.b16 %v802, %v801
    %v806 = vunpack.c.l.b16 %v791
    %v807 = vunpack.c.l.b16 %v792
    %v808 = vpack.c.b16 %v807, %v806
    %v810 = vsel %vm348, %v803, 0
    %v813 = vsel %vm348, %v808, 0
    %815 = vmatpush.bf16.xpose.msra.mxu0 0
    %816 = vmatpush.bf16.xpose.msra.mxu0 0
    %817 = vmatpush.bf16.xpose.msra.mxu0 0
    %818 = vmatpush.bf16.xpose.msra.mxu0 0
    %819 = vmatpush.bf16.xpose.msra.mxu0 0
    %820 = vmatpush.bf16.xpose.msra.mxu0 0
    %821 = vmatpush.bf16.xpose.msra.mxu0 0
    %822 = vmatpush.bf16.xpose.msra.mxu0 %v813
    %823 = vmatmul.bf16.gmra.mxu0 %v810
    %v824 = vpop.f32.mrf.mxu0
    %v825 = vadd.f32 0.0, %v824
    %v826 = vpop.f32.mrf.mxu0
    %v827 = vadd.f32 0.0, %v826
    %828 = vdwg.mxu0
    %v831 = vunpack.c.l.b16 %v789
    %v832 = vunpack.c.l.b16 %v790
    %v833 = vpack.c.b16 %v832, %v831
    %v836 = vunpack.c.l.b16 %v793
    %v837 = vunpack.c.l.b16 %v794
    %v838 = vpack.c.b16 %v837, %v836
    %v840 = vsel %vm348, %v833, 0
    %v843 = vsel %vm348, %v838, 0
    %845 = vmatpush.bf16.xpose.msra.mxu0 0
    %846 = vmatpush.bf16.xpose.msra.mxu0 0
    %847 = vmatpush.bf16.xpose.msra.mxu0 0
    %848 = vmatpush.bf16.xpose.msra.mxu0 0
    %849 = vmatpush.bf16.xpose.msra.mxu0 0
    %850 = vmatpush.bf16.xpose.msra.mxu0 0
    %851 = vmatpush.bf16.xpose.msra.mxu0 0
    %852 = vmatpush.bf16.xpose.msra.mxu0 %v843
    %853 = vmatmul.bf16.gmra.mxu0 %v840
    %v854 = vpop.f32.mrf.mxu0
    %v855 = vadd.f32 0.0, %v854
    %v856 = vpop.f32.mrf.mxu0
    %v857 = vadd.f32 0.0, %v856
    %858 = vdwg.mxu0
    %v859 = vsel %vm403, -1e+09, %v825
    %v860 = vsel %vm403, -1e+09, %v827
    %v861 = vsel %vm404, -1e+09, %v855
    %v862 = vsel %vm404, -1e+09, %v857
    %v863 = vsel %vm409, %v859, -inf
    %864 = vmax.xlane.f32.xlu0 %v863
    %v865 = vpop.xlane.xlu0 %864
    %v866 = vsel %vm409, %v860, -inf
    %867 = vmax.xlane.f32.xlu0 %v866
    %v868 = vpop.xlane.xlu0 %867
    %v869 = vsel %vm409, %v861, -inf
    %870 = vmax.xlane.f32.xlu0 %v869
    %v871 = vpop.xlane.xlu0 %870
    %v872 = vsel %vm409, %v862, -inf
    %873 = vmax.xlane.f32.xlu0 %v872
    %v874 = vpop.xlane.xlu0 %873
    %v875 = vsub.f32 %v859, %v865
    %v876 = vsub.f32 %v860, %v868
    %v877 = vsub.f32 %v861, %v871
    %v878 = vsub.f32 %v862, %v874
    %v879 = vmul.f32 %v875, 1.442695
    %v880 = vpow.pop %v879
    %v881 = vmul.f32 %v876, 1.442695
    %v882 = vpow.pop %v881
    %v883 = vmul.f32 %v877, 1.442695
    %v884 = vpow.pop %v883
    %v885 = vmul.f32 %v878, 1.442695
    %v886 = vpow.pop %v885
    %v887 = vsel %vm409, %v880, 0.0
    %888 = vadd.xlane.f32.xlu0 %v887
    %v889 = vpop.xlane.xlu0 %888
    %v890 = vsel %vm409, %v882, 0.0
    %891 = vadd.xlane.f32.xlu0 %v890
    %v892 = vpop.xlane.xlu0 %891
    %v893 = vsel %vm409, %v884, 0.0
    %894 = vadd.xlane.f32.xlu0 %v893
    %v895 = vpop.xlane.xlu0 %894
    %v896 = vsel %vm409, %v886, 0.0
    %897 = vadd.xlane.f32.xlu0 %v896
    %v898 = vpop.xlane.xlu0 %897
    %v899 = vrcp.pop %v889
    %v900 = vrcp.pop %v892
    %v901 = vrcp.pop %v895
    %v902 = vrcp.pop %v898
    %v903 = vmul.f32 %v880, %v899
    %v904 = vmul.f32 %v882, %v900
    %v905 = vmul.f32 %v884, %v901
    %v906 = vmul.f32 %v886, %v902
    %v907 = vpack.c.bf16 %v903, %v903
    %v908 = vpack.c.bf16 %v904, %v904
    %v909 = vpack.c.bf16 %v905, %v905
    %v910 = vpack.c.bf16 %v906, %v906
    %v913 = vunpack.c.l.b16 %v907
    %v914 = vunpack.c.l.b16 %v908
    %v915 = vpack.c.b16 %v914, %v913
    %v918 = vunpack.c.l.b16 %v795
    %v919 = vunpack.c.l.b16 %v796
    %v920 = vpack.c.b16 %v919, %v918
    %v923 = vsel %vm409, %v915, 0
    %925 = vmatpush.bf16.msra.mxu0 0
    %926 = vmatpush.bf16.msra.mxu0 0
    %927 = vmatpush.bf16.msra.mxu0 0
    %928 = vmatpush.bf16.msra.mxu0 0
    %929 = vmatpush.bf16.msra.mxu0 0
    %930 = vmatpush.bf16.msra.mxu0 0
    %931 = vmatpush.bf16.msra.mxu0 0
    %932 = vmatpush.bf16.msra.mxu0 %v920
    %933 = vmatmul.bf16.gmra.mxu0 %v923
    %v934 = vpop.f32.mrf.mxu0
    %v935 = vadd.f32 0.0, %v934
    %v936 = vpop.f32.mrf.mxu0
    %v937 = vadd.f32 0.0, %v936
    %938 = vdwg.mxu0
    %v941 = vunpack.c.l.b16 %v909
    %v942 = vunpack.c.l.b16 %v910
    %v943 = vpack.c.b16 %v942, %v941
    %v946 = vunpack.c.l.b16 %v797
    %v947 = vunpack.c.l.b16 %v798
    %v948 = vpack.c.b16 %v947, %v946
    %v951 = vsel %vm409, %v943, 0
    %953 = vmatpush.bf16.msra.mxu0 0
    %954 = vmatpush.bf16.msra.mxu0 0
    %955 = vmatpush.bf16.msra.mxu0 0
    %956 = vmatpush.bf16.msra.mxu0 0
    %957 = vmatpush.bf16.msra.mxu0 0
    %958 = vmatpush.bf16.msra.mxu0 0
    %959 = vmatpush.bf16.msra.mxu0 0
    %960 = vmatpush.bf16.msra.mxu0 %v948
    %961 = vmatmul.bf16.gmra.mxu0 %v951
    %v962 = vpop.f32.mrf.mxu0
    %v963 = vadd.f32 0.0, %v962
    %v964 = vpop.f32.mrf.mxu0
    %v965 = vadd.f32 0.0, %v964
    %966 = vdwg.mxu0
    %v967 = vpack.c.bf16 %v937, %v935
    %v968 = vpack.c.bf16 %v965, %v963
    %s969 = scalar_lea.vmem %s10, 16
    %v970 = vld [vmem:[%s969] sm:$0xf]
    %v971 = vld [vmem:[%s969 + $0x4] sm:$0xf]
    %v972 = vld [vmem:[%s969 + $0x8] sm:$0xf]
    %v973 = vld [vmem:[%s969 + $0xc] sm:$0xf]
    %v978 = vunpack.c.l.b16 %v970
    %v979 = vunpack.c.l.b16 %v971
    %v980 = vunpack.c.l.b16 %v972
    %v981 = vunpack.c.l.b16 %v973
    %v982 = vpack.c.b16 %v979, %v978
    %v983 = vpack.c.b16 %v981, %v980
    %v987 = vsel %vm348, %v967, 0
    %v990 = vsel %vm348, %v968, 0
    %992 = vmatpush.bf16.msra.mxu0 0
    %993 = vmatpush.bf16.msra.mxu0 0
    %994 = vmatpush.bf16.msra.mxu0 0
    %995 = vmatpush.bf16.msra.mxu0 0
    %996 = vmatpush.bf16.msra.mxu0 0
    %997 = vmatpush.bf16.msra.mxu0 0
    %998 = vmatpush.bf16.msra.mxu0 %v983
    %999 = vmatpush.bf16.msra.mxu0 %v982
    %1000 = vmatmul.bf16.gmra.mxu0 %v987
    %v1001 = vpop.f32.mrf.mxu0
    %v1002 = vadd.f32 0.0, %v1001
    %v1003 = vpop.f32.mrf.mxu0
    %v1004 = vadd.f32 0.0, %v1003
    %1005 = vmatmul.bf16.gmra.mxu0 %v990
    %v1006 = vpop.f32.mrf.mxu0
    %v1007 = vadd.f32 0.0, %v1006
    %v1008 = vpop.f32.mrf.mxu0
    %v1009 = vadd.f32 0.0, %v1008
    %1010 = vdwg.mxu0
    %v1015 = vunpack.c.l.b16 %v516
    %v1016 = vunpack.c.l.b16 %v517
    %v1017 = vunpack.c.l.b16 %v518
    %v1018 = vunpack.c.l.b16 %v519
    %v1019 = vpack.c.b16 %v1016, %v1015
    %v1020 = vpack.c.b16 %v1018, %v1017
    %v1024 = vsel %vm348, %v514, 0
    %v1027 = vsel %vm348, %v515, 0
    %1029 = vmatpush.bf16.msra.mxu0 0
    %1030 = vmatpush.bf16.msra.mxu0 0
    %1031 = vmatpush.bf16.msra.mxu0 0
    %1032 = vmatpush.bf16.msra.mxu0 0
    %1033 = vmatpush.bf16.msra.mxu0 0
    %1034 = vmatpush.bf16.msra.mxu0 0
    %1035 = vmatpush.bf16.msra.mxu0 %v1020
    %1036 = vmatpush.bf16.msra.mxu0 %v1019
    %1037 = vmatmul.bf16.gmra.mxu0 %v1024
    %v1038 = vpop.f32.mrf.mxu0
    %v1039 = vadd.f32 %v1002, %v1038
    %v1040 = vpop.f32.mrf.mxu0
    %v1041 = vadd.f32 %v1004, %v1040
    %1042 = vmatmul.bf16.gmra.mxu0 %v1027
    %v1043 = vpop.f32.mrf.mxu0
    %v1044 = vadd.f32 %v1007, %v1043
    %v1045 = vpop.f32.mrf.mxu0
    %v1046 = vadd.f32 %v1009, %v1045
    %1047 = vdwg.mxu0
    %s1048 = scalar_lea.vmem %s4, 128
    %v1049 = vld [vmem:[%s1048] sm:$0xf]
    %v1050 = vld [vmem:[%s1048 + $0x4] sm:$0xf]
    %v1051 = vld [vmem:[%s1048 + $0x8] sm:$0xf]
    %v1052 = vld [vmem:[%s1048 + $0xc] sm:$0xf]
    %v1053 = vld [vmem:[%s1048 + $0x10] sm:$0xf]
    %v1054 = vld [vmem:[%s1048 + $0x14] sm:$0xf]
    %v1055 = vld [vmem:[%s1048 + $0x18] sm:$0xf]
    %v1056 = vld [vmem:[%s1048 + $0x1c] sm:$0xf]
    %v1057 = vld [vmem:[%s1048 + $0x20] sm:$0xf]
    %v1058 = vld [vmem:[%s1048 + $0x24] sm:$0xf]
    %v1059 = vld [vmem:[%s1048 + $0x28] sm:$0xf]
    %v1060 = vld [vmem:[%s1048 + $0x2c] sm:$0xf]
    %v1061 = vld [vmem:[%s1048 + $0x30] sm:$0xf]
    %v1062 = vld [vmem:[%s1048 + $0x34] sm:$0xf]
    %v1063 = vld [vmem:[%s1048 + $0x38] sm:$0xf]
    %v1064 = vld [vmem:[%s1048 + $0x3c] sm:$0xf]
    %s1065 = scalar_lea.vmem %s5, 2
    %v1066 = vld [vmem:[%s1065] sm:$0x1]
    %v1068 = vperm.slane %v1066, 0
    %v1086 = vunpack.c.l.b16 %v1049
    %v1087 = vunpack.c.l.b16 %v1050
    %v1088 = vunpack.c.l.b16 %v1051
    %v1089 = vunpack.c.l.b16 %v1052
    %v1090 = vunpack.c.l.b16 %v1053
    %v1091 = vunpack.c.l.b16 %v1054
    %v1092 = vunpack.c.l.b16 %v1055
    %v1093 = vunpack.c.l.b16 %v1056
    %v1094 = vunpack.c.l.b16 %v1057
    %v1095 = vunpack.c.l.b16 %v1058
    %v1096 = vunpack.c.l.b16 %v1059
    %v1097 = vunpack.c.l.b16 %v1060
    %v1098 = vunpack.c.l.b16 %v1061
    %v1099 = vunpack.c.l.b16 %v1062
    %v1100 = vunpack.c.l.b16 %v1063
    %v1101 = vunpack.c.l.b16 %v1064
    %v1102 = vpack.c.b16 %v1087, %v1086
    %v1103 = vpack.c.b16 %v1089, %v1088
    %v1104 = vpack.c.b16 %v1091, %v1090
    %v1105 = vpack.c.b16 %v1093, %v1092
    %v1106 = vpack.c.b16 %v1095, %v1094
    %v1107 = vpack.c.b16 %v1097, %v1096
    %v1108 = vpack.c.b16 %v1099, %v1098
    %v1109 = vpack.c.b16 %v1101, %v1100
    %1118 = vmatpush.bf16.msra.mxu0 %v1109
    %1119 = vmatpush.bf16.msra.mxu0 %v1108
    %1120 = vmatpush.bf16.msra.mxu0 %v1107
    %1121 = vmatpush.bf16.msra.mxu0 %v1106
    %1122 = vmatpush.bf16.msra.mxu0 %v1105
    %1123 = vmatpush.bf16.msra.mxu0 %v1104
    %1124 = vmatpush.bf16.msra.mxu0 %v1103
    %1125 = vmatpush.bf16.msra.mxu0 %v1102
    %1126 = vmatmul.bf16.gmra.mxu0 %v47
    %v1127 = vpop.f32.mrf.mxu0
    %v1128 = vadd.f32 %v1068, %v1127
    %v1129 = vpop.f32.mrf.mxu0
    %v1130 = vadd.f32 %v1068, %v1129
    %1131 = vmatmul.bf16.gmra.mxu0 %v48
    %v1132 = vpop.f32.mrf.mxu0
    %v1133 = vadd.f32 %v1068, %v1132
    %v1134 = vpop.f32.mrf.mxu0
    %v1135 = vadd.f32 %v1068, %v1134
    %1136 = vdwg.mxu0
    %s1137 = scalar_lea.vmem %s6, 128
    %v1138 = vld [vmem:[%s1137] sm:$0xf]
    %v1139 = vld [vmem:[%s1137 + $0x4] sm:$0xf]
    %v1140 = vld [vmem:[%s1137 + $0x8] sm:$0xf]
    %v1141 = vld [vmem:[%s1137 + $0xc] sm:$0xf]
    %v1142 = vld [vmem:[%s1137 + $0x10] sm:$0xf]
    %v1143 = vld [vmem:[%s1137 + $0x14] sm:$0xf]
    %v1144 = vld [vmem:[%s1137 + $0x18] sm:$0xf]
    %v1145 = vld [vmem:[%s1137 + $0x1c] sm:$0xf]
    %v1146 = vld [vmem:[%s1137 + $0x20] sm:$0xf]
    %v1147 = vld [vmem:[%s1137 + $0x24] sm:$0xf]
    %v1148 = vld [vmem:[%s1137 + $0x28] sm:$0xf]
    %v1149 = vld [vmem:[%s1137 + $0x2c] sm:$0xf]
    %v1150 = vld [vmem:[%s1137 + $0x30] sm:$0xf]
    %v1151 = vld [vmem:[%s1137 + $0x34] sm:$0xf]
    %v1152 = vld [vmem:[%s1137 + $0x38] sm:$0xf]
    %v1153 = vld [vmem:[%s1137 + $0x3c] sm:$0xf]
    %s1154 = scalar_lea.vmem %s7, 2
    %v1155 = vld [vmem:[%s1154] sm:$0x1]
    %v1157 = vperm.slane %v1155, 0
    %v1175 = vunpack.c.l.b16 %v1138
    %v1176 = vunpack.c.l.b16 %v1139
    %v1177 = vunpack.c.l.b16 %v1140
    %v1178 = vunpack.c.l.b16 %v1141
    %v1179 = vunpack.c.l.b16 %v1142
    %v1180 = vunpack.c.l.b16 %v1143
    %v1181 = vunpack.c.l.b16 %v1144
    %v1182 = vunpack.c.l.b16 %v1145
    %v1183 = vunpack.c.l.b16 %v1146
    %v1184 = vunpack.c.l.b16 %v1147
    %v1185 = vunpack.c.l.b16 %v1148
    %v1186 = vunpack.c.l.b16 %v1149
    %v1187 = vunpack.c.l.b16 %v1150
    %v1188 = vunpack.c.l.b16 %v1151
    %v1189 = vunpack.c.l.b16 %v1152
    %v1190 = vunpack.c.l.b16 %v1153
    %v1191 = vpack.c.b16 %v1176, %v1175
    %v1192 = vpack.c.b16 %v1178, %v1177
    %v1193 = vpack.c.b16 %v1180, %v1179
    %v1194 = vpack.c.b16 %v1182, %v1181
    %v1195 = vpack.c.b16 %v1184, %v1183
    %v1196 = vpack.c.b16 %v1186, %v1185
    %v1197 = vpack.c.b16 %v1188, %v1187
    %v1198 = vpack.c.b16 %v1190, %v1189
    %1207 = vmatpush.bf16.msra.mxu0 %v1198
    %1208 = vmatpush.bf16.msra.mxu0 %v1197
    %1209 = vmatpush.bf16.msra.mxu0 %v1196
    %1210 = vmatpush.bf16.msra.mxu0 %v1195
    %1211 = vmatpush.bf16.msra.mxu0 %v1194
    %1212 = vmatpush.bf16.msra.mxu0 %v1193
    %1213 = vmatpush.bf16.msra.mxu0 %v1192
    %1214 = vmatpush.bf16.msra.mxu0 %v1191
    %1215 = vmatmul.bf16.gmra.mxu0 %v53
    %v1216 = vpop.f32.mrf.mxu0
    %v1217 = vadd.f32 %v1157, %v1216
    %v1218 = vpop.f32.mrf.mxu0
    %v1219 = vadd.f32 %v1157, %v1218
    %1220 = vmatmul.bf16.gmra.mxu0 %v54
    %v1221 = vpop.f32.mrf.mxu0
    %v1222 = vadd.f32 %v1157, %v1221
    %v1223 = vpop.f32.mrf.mxu0
    %v1224 = vadd.f32 %v1157, %v1223
    %1225 = vdwg.mxu0
    %s1226 = scalar_lea.vmem %s8, 128
    %v1227 = vld [vmem:[%s1226] sm:$0xf]
    %v1228 = vld [vmem:[%s1226 + $0x4] sm:$0xf]
    %v1229 = vld [vmem:[%s1226 + $0x8] sm:$0xf]
    %v1230 = vld [vmem:[%s1226 + $0xc] sm:$0xf]
    %v1231 = vld [vmem:[%s1226 + $0x10] sm:$0xf]
    %v1232 = vld [vmem:[%s1226 + $0x14] sm:$0xf]
    %v1233 = vld [vmem:[%s1226 + $0x18] sm:$0xf]
    %v1234 = vld [vmem:[%s1226 + $0x1c] sm:$0xf]
    %v1235 = vld [vmem:[%s1226 + $0x20] sm:$0xf]
    %v1236 = vld [vmem:[%s1226 + $0x24] sm:$0xf]
    %v1237 = vld [vmem:[%s1226 + $0x28] sm:$0xf]
    %v1238 = vld [vmem:[%s1226 + $0x2c] sm:$0xf]
    %v1239 = vld [vmem:[%s1226 + $0x30] sm:$0xf]
    %v1240 = vld [vmem:[%s1226 + $0x34] sm:$0xf]
    %v1241 = vld [vmem:[%s1226 + $0x38] sm:$0xf]
    %v1242 = vld [vmem:[%s1226 + $0x3c] sm:$0xf]
    %s1243 = scalar_lea.vmem %s9, 2
    %v1244 = vld [vmem:[%s1243] sm:$0x1]
    %v1246 = vperm.slane %v1244, 0
    %v1264 = vunpack.c.l.b16 %v1227
    %v1265 = vunpack.c.l.b16 %v1228
    %v1266 = vunpack.c.l.b16 %v1229
    %v1267 = vunpack.c.l.b16 %v1230
    %v1268 = vunpack.c.l.b16 %v1231
    %v1269 = vunpack.c.l.b16 %v1232
    %v1270 = vunpack.c.l.b16 %v1233
    %v1271 = vunpack.c.l.b16 %v1234
    %v1272 = vunpack.c.l.b16 %v1235
    %v1273 = vunpack.c.l.b16 %v1236
    %v1274 = vunpack.c.l.b16 %v1237
    %v1275 = vunpack.c.l.b16 %v1238
    %v1276 = vunpack.c.l.b16 %v1239
    %v1277 = vunpack.c.l.b16 %v1240
    %v1278 = vunpack.c.l.b16 %v1241
    %v1279 = vunpack.c.l.b16 %v1242
    %v1280 = vpack.c.b16 %v1265, %v1264
    %v1281 = vpack.c.b16 %v1267, %v1266
    %v1282 = vpack.c.b16 %v1269, %v1268
    %v1283 = vpack.c.b16 %v1271, %v1270
    %v1284 = vpack.c.b16 %v1273, %v1272
    %v1285 = vpack.c.b16 %v1275, %v1274
    %v1286 = vpack.c.b16 %v1277, %v1276
    %v1287 = vpack.c.b16 %v1279, %v1278
    %1296 = vmatpush.bf16.msra.mxu0 %v1287
    %1297 = vmatpush.bf16.msra.mxu0 %v1286
    %1298 = vmatpush.bf16.msra.mxu0 %v1285
    %1299 = vmatpush.bf16.msra.mxu0 %v1284
    %1300 = vmatpush.bf16.msra.mxu0 %v1283
    %1301 = vmatpush.bf16.msra.mxu0 %v1282
    %1302 = vmatpush.bf16.msra.mxu0 %v1281
    %1303 = vmatpush.bf16.msra.mxu0 %v1280
    %1304 = vmatmul.bf16.gmra.mxu0 %v59
    %v1305 = vpop.f32.mrf.mxu0
    %v1306 = vadd.f32 %v1246, %v1305
    %v1307 = vpop.f32.mrf.mxu0
    %v1308 = vadd.f32 %v1246, %v1307
    %1309 = vmatmul.bf16.gmra.mxu0 %v60
    %v1310 = vpop.f32.mrf.mxu0
    %v1311 = vadd.f32 %v1246, %v1310
    %v1312 = vpop.f32.mrf.mxu0
    %v1313 = vadd.f32 %v1246, %v1312
    %1314 = vdwg.mxu0
    %v1315 = vpack.c.bf16 %v1128, %v1128
    %v1316 = vpack.c.bf16 %v1130, %v1130
    %v1317 = vpack.c.bf16 %v1133, %v1133
    %v1318 = vpack.c.bf16 %v1135, %v1135
    %v1319 = vpack.c.bf16 %v1217, %v1217
    %v1320 = vpack.c.bf16 %v1219, %v1219
    %v1321 = vpack.c.bf16 %v1222, %v1222
    %v1322 = vpack.c.bf16 %v1224, %v1224
    %v1323 = vpack.c.bf16 %v1306, %v1306
    %v1324 = vpack.c.bf16 %v1308, %v1308
    %v1325 = vpack.c.bf16 %v1311, %v1311
    %v1326 = vpack.c.bf16 %v1313, %v1313
    %v1329 = vunpack.c.l.b16 %v1315
    %v1330 = vunpack.c.l.b16 %v1316
    %v1331 = vpack.c.b16 %v1330, %v1329
    %v1334 = vunpack.c.l.b16 %v1319
    %v1335 = vunpack.c.l.b16 %v1320
    %v1336 = vpack.c.b16 %v1335, %v1334
    %v1338 = vsel %vm348, %v1331, 0
    %v1341 = vsel %vm348, %v1336, 0
    %1343 = vmatpush.bf16.xpose.msra.mxu0 0
    %1344 = vmatpush.bf16.xpose.msra.mxu0 0
    %1345 = vmatpush.bf16.xpose.msra.mxu0 0
    %1346 = vmatpush.bf16.xpose.msra.mxu0 0
    %1347 = vmatpush.bf16.xpose.msra.mxu0 0
    %1348 = vmatpush.bf16.xpose.msra.mxu0 0
    %1349 = vmatpush.bf16.xpose.msra.mxu0 0
    %1350 = vmatpush.bf16.xpose.msra.mxu0 %v1341
    %1351 = vmatmul.bf16.gmra.mxu0 %v1338
    %v1352 = vpop.f32.mrf.mxu0
    %v1353 = vadd.f32 0.0, %v1352
    %v1354 = vpop.f32.mrf.mxu0
    %v1355 = vadd.f32 0.0, %v1354
    %1356 = vdwg.mxu0
    %v1359 = vunpack.c.l.b16 %v1317
    %v1360 = vunpack.c.l.b16 %v1318
    %v1361 = vpack.c.b16 %v1360, %v1359
    %v1364 = vunpack.c.l.b16 %v1321
    %v1365 = vunpack.c.l.b16 %v1322
    %v1366 = vpack.c.b16 %v1365, %v1364
    %v1368 = vsel %vm348, %v1361, 0
    %v1371 = vsel %vm348, %v1366, 0
    %1373 = vmatpush.bf16.xpose.msra.mxu0 0
    %1374 = vmatpush.bf16.xpose.msra.mxu0 0
    %1375 = vmatpush.bf16.xpose.msra.mxu0 0
    %1376 = vmatpush.bf16.xpose.msra.mxu0 0
    %1377 = vmatpush.bf16.xpose.msra.mxu0 0
    %1378 = vmatpush.bf16.xpose.msra.mxu0 0
    %1379 = vmatpush.bf16.xpose.msra.mxu0 0
    %1380 = vmatpush.bf16.xpose.msra.mxu0 %v1371
    %1381 = vmatmul.bf16.gmra.mxu0 %v1368
    %v1382 = vpop.f32.mrf.mxu0
    %v1383 = vadd.f32 0.0, %v1382
    %v1384 = vpop.f32.mrf.mxu0
    %v1385 = vadd.f32 0.0, %v1384
    %1386 = vdwg.mxu0
    %v1387 = vsel %vm403, -1e+09, %v1353
    %v1388 = vsel %vm403, -1e+09, %v1355
    %v1389 = vsel %vm404, -1e+09, %v1383
    %v1390 = vsel %vm404, -1e+09, %v1385
    %v1391 = vsel %vm409, %v1387, -inf
    %1392 = vmax.xlane.f32.xlu0 %v1391
    %v1393 = vpop.xlane.xlu0 %1392
    %v1394 = vsel %vm409, %v1388, -inf
    %1395 = vmax.xlane.f32.xlu0 %v1394
    %v1396 = vpop.xlane.xlu0 %1395
    %v1397 = vsel %vm409, %v1389, -inf
    %1398 = vmax.xlane.f32.xlu0 %v1397
    %v1399 = vpop.xlane.xlu0 %1398
    %v1400 = vsel %vm409, %v1390, -inf
    %1401 = vmax.xlane.f32.xlu0 %v1400
    %v1402 = vpop.xlane.xlu0 %1401
    %v1403 = vsub.f32 %v1387, %v1393
    %v1404 = vsub.f32 %v1388, %v1396
    %v1405 = vsub.f32 %v1389, %v1399
    %v1406 = vsub.f32 %v1390, %v1402
    %v1407 = vmul.f32 %v1403, 1.442695
    %v1408 = vpow.pop %v1407
    %v1409 = vmul.f32 %v1404, 1.442695
    %v1410 = vpow.pop %v1409
    %v1411 = vmul.f32 %v1405, 1.442695
    %v1412 = vpow.pop %v1411
    %v1413 = vmul.f32 %v1406, 1.442695
    %v1414 = vpow.pop %v1413
    %v1415 = vsel %vm409, %v1408, 0.0
    %1416 = vadd.xlane.f32.xlu0 %v1415
    %v1417 = vpop.xlane.xlu0 %1416
    %v1418 = vsel %vm409, %v1410, 0.0
    %1419 = vadd.xlane.f32.xlu0 %v1418
    %v1420 = vpop.xlane.xlu0 %1419
    %v1421 = vsel %vm409, %v1412, 0.0
    %1422 = vadd.xlane.f32.xlu0 %v1421
    %v1423 = vpop.xlane.xlu0 %1422
    %v1424 = vsel %vm409, %v1414, 0.0
    %1425 = vadd.xlane.f32.xlu0 %v1424
    %v1426 = vpop.xlane.xlu0 %1425
    %v1427 = vrcp.pop %v1417
    %v1428 = vrcp.pop %v1420
    %v1429 = vrcp.pop %v1423
    %v1430 = vrcp.pop %v1426
    %v1431 = vmul.f32 %v1408, %v1427
    %v1432 = vmul.f32 %v1410, %v1428
    %v1433 = vmul.f32 %v1412, %v1429
    %v1434 = vmul.f32 %v1414, %v1430
    %v1435 = vpack.c.bf16 %v1431, %v1431
    %v1436 = vpack.c.bf16 %v1432, %v1432
    %v1437 = vpack.c.bf16 %v1433, %v1433
    %v1438 = vpack.c.bf16 %v1434, %v1434
    %v1441 = vunpack.c.l.b16 %v1435
    %v1442 = vunpack.c.l.b16 %v1436
    %v1443 = vpack.c.b16 %v1442, %v1441
    %v1446 = vunpack.c.l.b16 %v1323
    %v1447 = vunpack.c.l.b16 %v1324
    %v1448 = vpack.c.b16 %v1447, %v1446
    %v1451 = vsel %vm409, %v1443, 0
    %1453 = vmatpush.bf16.msra.mxu0 0
    %1454 = vmatpush.bf16.msra.mxu0 0
    %1455 = vmatpush.bf16.msra.mxu0 0
    %1456 = vmatpush.bf16.msra.mxu0 0
    %1457 = vmatpush.bf16.msra.mxu0 0
    %1458 = vmatpush.bf16.msra.mxu0 0
    %1459 = vmatpush.bf16.msra.mxu0 0
    %1460 = vmatpush.bf16.msra.mxu0 %v1448
    %1461 = vmatmul.bf16.gmra.mxu0 %v1451
    %v1462 = vpop.f32.mrf.mxu0
    %v1463 = vadd.f32 0.0, %v1462
    %v1464 = vpop.f32.mrf.mxu0
    %v1465 = vadd.f32 0.0, %v1464
    %1466 = vdwg.mxu0
    %v1469 = vunpack.c.l.b16 %v1437
    %v1470 = vunpack.c.l.b16 %v1438
    %v1471 = vpack.c.b16 %v1470, %v1469
    %v1474 = vunpack.c.l.b16 %v1325
    %v1475 = vunpack.c.l.b16 %v1326
    %v1476 = vpack.c.b16 %v1475, %v1474
    %v1479 = vsel %vm409, %v1471, 0
    %1481 = vmatpush.bf16.msra.mxu0 0
    %1482 = vmatpush.bf16.msra.mxu0 0
    %1483 = vmatpush.bf16.msra.mxu0 0
    %1484 = vmatpush.bf16.msra.mxu0 0
    %1485 = vmatpush.bf16.msra.mxu0 0
    %1486 = vmatpush.bf16.msra.mxu0 0
    %1487 = vmatpush.bf16.msra.mxu0 0
    %1488 = vmatpush.bf16.msra.mxu0 %v1476
    %1489 = vmatmul.bf16.gmra.mxu0 %v1479
    %v1490 = vpop.f32.mrf.mxu0
    %v1491 = vadd.f32 0.0, %v1490
    %v1492 = vpop.f32.mrf.mxu0
    %v1493 = vadd.f32 0.0, %v1492
    %1494 = vdwg.mxu0
    %v1495 = vpack.c.bf16 %v1465, %v1463
    %v1496 = vpack.c.bf16 %v1493, %v1491
    %s1497 = scalar_lea.vmem %s10, 32
    %v1498 = vld [vmem:[%s1497] sm:$0xf]
    %v1499 = vld [vmem:[%s1497 + $0x4] sm:$0xf]
    %v1500 = vld [vmem:[%s1497 + $0x8] sm:$0xf]
    %v1501 = vld [vmem:[%s1497 + $0xc] sm:$0xf]
    %v1506 = vunpack.c.l.b16 %v1498
    %v1507 = vunpack.c.l.b16 %v1499
    %v1508 = vunpack.c.l.b16 %v1500
    %v1509 = vunpack.c.l.b16 %v1501
    %v1510 = vpack.c.b16 %v1507, %v1506
    %v1511 = vpack.c.b16 %v1509, %v1508
    %v1515 = vsel %vm348, %v1495, 0
    %v1518 = vsel %vm348, %v1496, 0
    %1520 = vmatpush.bf16.msra.mxu0 0
    %1521 = vmatpush.bf16.msra.mxu0 0
    %1522 = vmatpush.bf16.msra.mxu0 0
    %1523 = vmatpush.bf16.msra.mxu0 0
    %1524 = vmatpush.bf16.msra.mxu0 0
    %1525 = vmatpush.bf16.msra.mxu0 0
    %1526 = vmatpush.bf16.msra.mxu0 %v1511
    %1527 = vmatpush.bf16.msra.mxu0 %v1510
    %1528 = vmatmul.bf16.gmra.mxu0 %v1515
    %v1529 = vpop.f32.mrf.mxu0
    %v1530 = vadd.f32 0.0, %v1529
    %v1531 = vpop.f32.mrf.mxu0
    %v1532 = vadd.f32 0.0, %v1531
    %1533 = vmatmul.bf16.gmra.mxu0 %v1518
    %v1534 = vpop.f32.mrf.mxu0
    %v1535 = vadd.f32 0.0, %v1534
    %v1536 = vpop.f32.mrf.mxu0
    %v1537 = vadd.f32 0.0, %v1536
    %1538 = vdwg.mxu0
    %v1539 = vadd.f32 %v1039, %v1530
    %v1540 = vadd.f32 %v1041, %v1532
    %v1541 = vadd.f32 %v1044, %v1535
    %v1542 = vadd.f32 %v1046, %v1537
    %s1543 = scalar_lea.vmem %s4, 192
    %v1544 = vld [vmem:[%s1543] sm:$0xf]
    %v1545 = vld [vmem:[%s1543 + $0x4] sm:$0xf]
    %v1546 = vld [vmem:[%s1543 + $0x8] sm:$0xf]
    %v1547 = vld [vmem:[%s1543 + $0xc] sm:$0xf]
    %v1548 = vld [vmem:[%s1543 + $0x10] sm:$0xf]
    %v1549 = vld [vmem:[%s1543 + $0x14] sm:$0xf]
    %v1550 = vld [vmem:[%s1543 + $0x18] sm:$0xf]
    %v1551 = vld [vmem:[%s1543 + $0x1c] sm:$0xf]
    %v1552 = vld [vmem:[%s1543 + $0x20] sm:$0xf]
    %v1553 = vld [vmem:[%s1543 + $0x24] sm:$0xf]
    %v1554 = vld [vmem:[%s1543 + $0x28] sm:$0xf]
    %v1555 = vld [vmem:[%s1543 + $0x2c] sm:$0xf]
    %v1556 = vld [vmem:[%s1543 + $0x30] sm:$0xf]
    %v1557 = vld [vmem:[%s1543 + $0x34] sm:$0xf]
    %v1558 = vld [vmem:[%s1543 + $0x38] sm:$0xf]
    %v1559 = vld [vmem:[%s1543 + $0x3c] sm:$0xf]
    %s1560 = scalar_lea.vmem %s5, 3
    %v1561 = vld [vmem:[%s1560] sm:$0x1]
    %v1563 = vperm.slane %v1561, 0
    %v1581 = vunpack.c.l.b16 %v1544
    %v1582 = vunpack.c.l.b16 %v1545
    %v1583 = vunpack.c.l.b16 %v1546
    %v1584 = vunpack.c.l.b16 %v1547
    %v1585 = vunpack.c.l.b16 %v1548
    %v1586 = vunpack.c.l.b16 %v1549
    %v1587 = vunpack.c.l.b16 %v1550
    %v1588 = vunpack.c.l.b16 %v1551
    %v1589 = vunpack.c.l.b16 %v1552
    %v1590 = vunpack.c.l.b16 %v1553
    %v1591 = vunpack.c.l.b16 %v1554
    %v1592 = vunpack.c.l.b16 %v1555
    %v1593 = vunpack.c.l.b16 %v1556
    %v1594 = vunpack.c.l.b16 %v1557
    %v1595 = vunpack.c.l.b16 %v1558
    %v1596 = vunpack.c.l.b16 %v1559
    %v1597 = vpack.c.b16 %v1582, %v1581
    %v1598 = vpack.c.b16 %v1584, %v1583
    %v1599 = vpack.c.b16 %v1586, %v1585
    %v1600 = vpack.c.b16 %v1588, %v1587
    %v1601 = vpack.c.b16 %v1590, %v1589
    %v1602 = vpack.c.b16 %v1592, %v1591
    %v1603 = vpack.c.b16 %v1594, %v1593
    %v1604 = vpack.c.b16 %v1596, %v1595
    %1613 = vmatpush.bf16.msra.mxu0 %v1604
    %1614 = vmatpush.bf16.msra.mxu0 %v1603
    %1615 = vmatpush.bf16.msra.mxu0 %v1602
    %1616 = vmatpush.bf16.msra.mxu0 %v1601
    %1617 = vmatpush.bf16.msra.mxu0 %v1600
    %1618 = vmatpush.bf16.msra.mxu0 %v1599
    %1619 = vmatpush.bf16.msra.mxu0 %v1598
    %1620 = vmatpush.bf16.msra.mxu0 %v1597
    %1621 = vmatmul.bf16.gmra.mxu0 %v47
    %v1622 = vpop.f32.mrf.mxu0
    %v1623 = vadd.f32 %v1563, %v1622
    %v1624 = vpop.f32.mrf.mxu0
    %v1625 = vadd.f32 %v1563, %v1624
    %1626 = vmatmul.bf16.gmra.mxu0 %v48
    %v1627 = vpop.f32.mrf.mxu0
    %v1628 = vadd.f32 %v1563, %v1627
    %v1629 = vpop.f32.mrf.mxu0
    %v1630 = vadd.f32 %v1563, %v1629
    %1631 = vdwg.mxu0
    %s1632 = scalar_lea.vmem %s6, 192
    %v1633 = vld [vmem:[%s1632] sm:$0xf]
    %v1634 = vld [vmem:[%s1632 + $0x4] sm:$0xf]
    %v1635 = vld [vmem:[%s1632 + $0x8] sm:$0xf]
    %v1636 = vld [vmem:[%s1632 + $0xc] sm:$0xf]
    %v1637 = vld [vmem:[%s1632 + $0x10] sm:$0xf]
    %v1638 = vld [vmem:[%s1632 + $0x14] sm:$0xf]
    %v1639 = vld [vmem:[%s1632 + $0x18] sm:$0xf]
    %v1640 = vld [vmem:[%s1632 + $0x1c] sm:$0xf]
    %v1641 = vld [vmem:[%s1632 + $0x20] sm:$0xf]
    %v1642 = vld [vmem:[%s1632 + $0x24] sm:$0xf]
    %v1643 = vld [vmem:[%s1632 + $0x28] sm:$0xf]
    %v1644 = vld [vmem:[%s1632 + $0x2c] sm:$0xf]
    %v1645 = vld [vmem:[%s1632 + $0x30] sm:$0xf]
    %v1646 = vld [vmem:[%s1632 + $0x34] sm:$0xf]
    %v1647 = vld [vmem:[%s1632 + $0x38] sm:$0xf]
    %v1648 = vld [vmem:[%s1632 + $0x3c] sm:$0xf]
    %s1649 = scalar_lea.vmem %s7, 3
    %v1650 = vld [vmem:[%s1649] sm:$0x1]
    %v1652 = vperm.slane %v1650, 0
    %v1670 = vunpack.c.l.b16 %v1633
    %v1671 = vunpack.c.l.b16 %v1634
    %v1672 = vunpack.c.l.b16 %v1635
    %v1673 = vunpack.c.l.b16 %v1636
    %v1674 = vunpack.c.l.b16 %v1637
    %v1675 = vunpack.c.l.b16 %v1638
    %v1676 = vunpack.c.l.b16 %v1639
    %v1677 = vunpack.c.l.b16 %v1640
    %v1678 = vunpack.c.l.b16 %v1641
    %v1679 = vunpack.c.l.b16 %v1642
    %v1680 = vunpack.c.l.b16 %v1643
    %v1681 = vunpack.c.l.b16 %v1644
    %v1682 = vunpack.c.l.b16 %v1645
    %v1683 = vunpack.c.l.b16 %v1646
    %v1684 = vunpack.c.l.b16 %v1647
    %v1685 = vunpack.c.l.b16 %v1648
    %v1686 = vpack.c.b16 %v1671, %v1670
    %v1687 = vpack.c.b16 %v1673, %v1672
    %v1688 = vpack.c.b16 %v1675, %v1674
    %v1689 = vpack.c.b16 %v1677, %v1676
    %v1690 = vpack.c.b16 %v1679, %v1678
    %v1691 = vpack.c.b16 %v1681, %v1680
    %v1692 = vpack.c.b16 %v1683, %v1682
    %v1693 = vpack.c.b16 %v1685, %v1684
    %1702 = vmatpush.bf16.msra.mxu0 %v1693
    %1703 = vmatpush.bf16.msra.mxu0 %v1692
    %1704 = vmatpush.bf16.msra.mxu0 %v1691
    %1705 = vmatpush.bf16.msra.mxu0 %v1690
    %1706 = vmatpush.bf16.msra.mxu0 %v1689
    %1707 = vmatpush.bf16.msra.mxu0 %v1688
    %1708 = vmatpush.bf16.msra.mxu0 %v1687
    %1709 = vmatpush.bf16.msra.mxu0 %v1686
    %1710 = vmatmul.bf16.gmra.mxu0 %v53
    %v1711 = vpop.f32.mrf.mxu0
    %v1712 = vadd.f32 %v1652, %v1711
    %v1713 = vpop.f32.mrf.mxu0
    %v1714 = vadd.f32 %v1652, %v1713
    %1715 = vmatmul.bf16.gmra.mxu0 %v54
    %v1716 = vpop.f32.mrf.mxu0
    %v1717 = vadd.f32 %v1652, %v1716
    %v1718 = vpop.f32.mrf.mxu0
    %v1719 = vadd.f32 %v1652, %v1718
    %1720 = vdwg.mxu0
    %s1721 = scalar_lea.vmem %s8, 192
    %v1722 = vld [vmem:[%s1721] sm:$0xf]
    %v1723 = vld [vmem:[%s1721 + $0x4] sm:$0xf]
    %v1724 = vld [vmem:[%s1721 + $0x8] sm:$0xf]
    %v1725 = vld [vmem:[%s1721 + $0xc] sm:$0xf]
    %v1726 = vld [vmem:[%s1721 + $0x10] sm:$0xf]
    %v1727 = vld [vmem:[%s1721 + $0x14] sm:$0xf]
    %v1728 = vld [vmem:[%s1721 + $0x18] sm:$0xf]
    %v1729 = vld [vmem:[%s1721 + $0x1c] sm:$0xf]
    %v1730 = vld [vmem:[%s1721 + $0x20] sm:$0xf]
    %v1731 = vld [vmem:[%s1721 + $0x24] sm:$0xf]
    %v1732 = vld [vmem:[%s1721 + $0x28] sm:$0xf]
    %v1733 = vld [vmem:[%s1721 + $0x2c] sm:$0xf]
    %v1734 = vld [vmem:[%s1721 + $0x30] sm:$0xf]
    %v1735 = vld [vmem:[%s1721 + $0x34] sm:$0xf]
    %v1736 = vld [vmem:[%s1721 + $0x38] sm:$0xf]
    %v1737 = vld [vmem:[%s1721 + $0x3c] sm:$0xf]
    %s1738 = scalar_lea.vmem %s9, 3
    %v1739 = vld [vmem:[%s1738] sm:$0x1]
    %v1741 = vperm.slane %v1739, 0
    %v1759 = vunpack.c.l.b16 %v1722
    %v1760 = vunpack.c.l.b16 %v1723
    %v1761 = vunpack.c.l.b16 %v1724
    %v1762 = vunpack.c.l.b16 %v1725
    %v1763 = vunpack.c.l.b16 %v1726
    %v1764 = vunpack.c.l.b16 %v1727
    %v1765 = vunpack.c.l.b16 %v1728
    %v1766 = vunpack.c.l.b16 %v1729
    %v1767 = vunpack.c.l.b16 %v1730
    %v1768 = vunpack.c.l.b16 %v1731
    %v1769 = vunpack.c.l.b16 %v1732
    %v1770 = vunpack.c.l.b16 %v1733
    %v1771 = vunpack.c.l.b16 %v1734
    %v1772 = vunpack.c.l.b16 %v1735
    %v1773 = vunpack.c.l.b16 %v1736
    %v1774 = vunpack.c.l.b16 %v1737
    %v1775 = vpack.c.b16 %v1760, %v1759
    %v1776 = vpack.c.b16 %v1762, %v1761
    %v1777 = vpack.c.b16 %v1764, %v1763
    %v1778 = vpack.c.b16 %v1766, %v1765
    %v1779 = vpack.c.b16 %v1768, %v1767
    %v1780 = vpack.c.b16 %v1770, %v1769
    %v1781 = vpack.c.b16 %v1772, %v1771
    %v1782 = vpack.c.b16 %v1774, %v1773
    %1791 = vmatpush.bf16.msra.mxu0 %v1782
    %1792 = vmatpush.bf16.msra.mxu0 %v1781
    %1793 = vmatpush.bf16.msra.mxu0 %v1780
    %1794 = vmatpush.bf16.msra.mxu0 %v1779
    %1795 = vmatpush.bf16.msra.mxu0 %v1778
    %1796 = vmatpush.bf16.msra.mxu0 %v1777
    %1797 = vmatpush.bf16.msra.mxu0 %v1776
    %1798 = vmatpush.bf16.msra.mxu0 %v1775
    %1799 = vmatmul.bf16.gmra.mxu0 %v59
    %v1800 = vpop.f32.mrf.mxu0
    %v1801 = vadd.f32 %v1741, %v1800
    %v1802 = vpop.f32.mrf.mxu0
    %v1803 = vadd.f32 %v1741, %v1802
    %1804 = vmatmul.bf16.gmra.mxu0 %v60
    %v1805 = vpop.f32.mrf.mxu0
    %v1806 = vadd.f32 %v1741, %v1805
    %v1807 = vpop.f32.mrf.mxu0
    %v1808 = vadd.f32 %v1741, %v1807
    %1809 = vdwg.mxu0
    %v1810 = vpack.c.bf16 %v1623, %v1623
    %v1811 = vpack.c.bf16 %v1625, %v1625
    %v1812 = vpack.c.bf16 %v1628, %v1628
    %v1813 = vpack.c.bf16 %v1630, %v1630
    %v1814 = vpack.c.bf16 %v1712, %v1712
    %v1815 = vpack.c.bf16 %v1714, %v1714
    %v1816 = vpack.c.bf16 %v1717, %v1717
    %v1817 = vpack.c.bf16 %v1719, %v1719
    %v1818 = vpack.c.bf16 %v1801, %v1801
    %v1819 = vpack.c.bf16 %v1803, %v1803
    %v1820 = vpack.c.bf16 %v1806, %v1806
    %v1821 = vpack.c.bf16 %v1808, %v1808
    %v1824 = vunpack.c.l.b16 %v1810
    %v1825 = vunpack.c.l.b16 %v1811
    %v1826 = vpack.c.b16 %v1825, %v1824
    %v1829 = vunpack.c.l.b16 %v1814
    %v1830 = vunpack.c.l.b16 %v1815
    %v1831 = vpack.c.b16 %v1830, %v1829
    %v1833 = vsel %vm348, %v1826, 0
    %v1836 = vsel %vm348, %v1831, 0
    %1838 = vmatpush.bf16.xpose.msra.mxu0 0
    %1839 = vmatpush.bf16.xpose.msra.mxu0 0
    %1840 = vmatpush.bf16.xpose.msra.mxu0 0
    %1841 = vmatpush.bf16.xpose.msra.mxu0 0
    %1842 = vmatpush.bf16.xpose.msra.mxu0 0
    %1843 = vmatpush.bf16.xpose.msra.mxu0 0
    %1844 = vmatpush.bf16.xpose.msra.mxu0 0
    %1845 = vmatpush.bf16.xpose.msra.mxu0 %v1836
    %1846 = vmatmul.bf16.gmra.mxu0 %v1833
    %v1847 = vpop.f32.mrf.mxu0
    %v1848 = vadd.f32 0.0, %v1847
    %v1849 = vpop.f32.mrf.mxu0
    %v1850 = vadd.f32 0.0, %v1849
    %1851 = vdwg.mxu0
    %v1854 = vunpack.c.l.b16 %v1812
    %v1855 = vunpack.c.l.b16 %v1813
    %v1856 = vpack.c.b16 %v1855, %v1854
    %v1859 = vunpack.c.l.b16 %v1816
    %v1860 = vunpack.c.l.b16 %v1817
    %v1861 = vpack.c.b16 %v1860, %v1859
    %v1863 = vsel %vm348, %v1856, 0
    %v1866 = vsel %vm348, %v1861, 0
    %1868 = vmatpush.bf16.xpose.msra.mxu0 0
    %1869 = vmatpush.bf16.xpose.msra.mxu0 0
    %1870 = vmatpush.bf16.xpose.msra.mxu0 0
    %1871 = vmatpush.bf16.xpose.msra.mxu0 0
    %1872 = vmatpush.bf16.xpose.msra.mxu0 0
    %1873 = vmatpush.bf16.xpose.msra.mxu0 0
    %1874 = vmatpush.bf16.xpose.msra.mxu0 0
    %1875 = vmatpush.bf16.xpose.msra.mxu0 %v1866
    %1876 = vmatmul.bf16.gmra.mxu0 %v1863
    %v1877 = vpop.f32.mrf.mxu0
    %v1878 = vadd.f32 0.0, %v1877
    %v1879 = vpop.f32.mrf.mxu0
    %v1880 = vadd.f32 0.0, %v1879
    %1881 = vdwg.mxu0
    %v1882 = vsel %vm403, -1e+09, %v1848
    %v1883 = vsel %vm403, -1e+09, %v1850
    %v1884 = vsel %vm404, -1e+09, %v1878
    %v1885 = vsel %vm404, -1e+09, %v1880
    %v1886 = vsel %vm409, %v1882, -inf
    %1887 = vmax.xlane.f32.xlu0 %v1886
    %v1888 = vpop.xlane.xlu0 %1887
    %v1889 = vsel %vm409, %v1883, -inf
    %1890 = vmax.xlane.f32.xlu0 %v1889
    %v1891 = vpop.xlane.xlu0 %1890
    %v1892 = vsel %vm409, %v1884, -inf
    %1893 = vmax.xlane.f32.xlu0 %v1892
    %v1894 = vpop.xlane.xlu0 %1893
    %v1895 = vsel %vm409, %v1885, -inf
    %1896 = vmax.xlane.f32.xlu0 %v1895
    %v1897 = vpop.xlane.xlu0 %1896
    %v1898 = vsub.f32 %v1882, %v1888
    %v1899 = vsub.f32 %v1883, %v1891
    %v1900 = vsub.f32 %v1884, %v1894
    %v1901 = vsub.f32 %v1885, %v1897
    %v1902 = vmul.f32 %v1898, 1.442695
    %v1903 = vpow.pop %v1902
    %v1904 = vmul.f32 %v1899, 1.442695
    %v1905 = vpow.pop %v1904
    %v1906 = vmul.f32 %v1900, 1.442695
    %v1907 = vpow.pop %v1906
    %v1908 = vmul.f32 %v1901, 1.442695
    %v1909 = vpow.pop %v1908
    %v1910 = vsel %vm409, %v1903, 0.0
    %1911 = vadd.xlane.f32.xlu0 %v1910
    %v1912 = vpop.xlane.xlu0 %1911
    %v1913 = vsel %vm409, %v1905, 0.0
    %1914 = vadd.xlane.f32.xlu0 %v1913
    %v1915 = vpop.xlane.xlu0 %1914
    %v1916 = vsel %vm409, %v1907, 0.0
    %1917 = vadd.xlane.f32.xlu0 %v1916
    %v1918 = vpop.xlane.xlu0 %1917
    %v1919 = vsel %vm409, %v1909, 0.0
    %1920 = vadd.xlane.f32.xlu0 %v1919
    %v1921 = vpop.xlane.xlu0 %1920
    %v1922 = vrcp.pop %v1912
    %v1923 = vrcp.pop %v1915
    %v1924 = vrcp.pop %v1918
    %v1925 = vrcp.pop %v1921
    %v1926 = vmul.f32 %v1903, %v1922
    %v1927 = vmul.f32 %v1905, %v1923
    %v1928 = vmul.f32 %v1907, %v1924
    %v1929 = vmul.f32 %v1909, %v1925
    %v1930 = vpack.c.bf16 %v1926, %v1926
    %v1931 = vpack.c.bf16 %v1927, %v1927
    %v1932 = vpack.c.bf16 %v1928, %v1928
    %v1933 = vpack.c.bf16 %v1929, %v1929
    %v1936 = vunpack.c.l.b16 %v1930
    %v1937 = vunpack.c.l.b16 %v1931
    %v1938 = vpack.c.b16 %v1937, %v1936
    %v1941 = vunpack.c.l.b16 %v1818
    %v1942 = vunpack.c.l.b16 %v1819
    %v1943 = vpack.c.b16 %v1942, %v1941
    %v1946 = vsel %vm409, %v1938, 0
    %1948 = vmatpush.bf16.msra.mxu0 0
    %1949 = vmatpush.bf16.msra.mxu0 0
    %1950 = vmatpush.bf16.msra.mxu0 0
    %1951 = vmatpush.bf16.msra.mxu0 0
    %1952 = vmatpush.bf16.msra.mxu0 0
    %1953 = vmatpush.bf16.msra.mxu0 0
    %1954 = vmatpush.bf16.msra.mxu0 0
    %1955 = vmatpush.bf16.msra.mxu0 %v1943
    %1956 = vmatmul.bf16.gmra.mxu0 %v1946
    %v1957 = vpop.f32.mrf.mxu0
    %v1958 = vadd.f32 0.0, %v1957
    %v1959 = vpop.f32.mrf.mxu0
    %v1960 = vadd.f32 0.0, %v1959
    %1961 = vdwg.mxu0
    %v1964 = vunpack.c.l.b16 %v1932
    %v1965 = vunpack.c.l.b16 %v1933
    %v1966 = vpack.c.b16 %v1965, %v1964
    %v1969 = vunpack.c.l.b16 %v1820
    %v1970 = vunpack.c.l.b16 %v1821
    %v1971 = vpack.c.b16 %v1970, %v1969
    %v1974 = vsel %vm409, %v1966, 0
    %1976 = vmatpush.bf16.msra.mxu0 0
    %1977 = vmatpush.bf16.msra.mxu0 0
    %1978 = vmatpush.bf16.msra.mxu0 0
    %1979 = vmatpush.bf16.msra.mxu0 0
    %1980 = vmatpush.bf16.msra.mxu0 0
    %1981 = vmatpush.bf16.msra.mxu0 0
    %1982 = vmatpush.bf16.msra.mxu0 0
    %1983 = vmatpush.bf16.msra.mxu0 %v1971
    %1984 = vmatmul.bf16.gmra.mxu0 %v1974
    %v1985 = vpop.f32.mrf.mxu0
    %v1986 = vadd.f32 0.0, %v1985
    %v1987 = vpop.f32.mrf.mxu0
    %v1988 = vadd.f32 0.0, %v1987
    %1989 = vdwg.mxu0
    %v1990 = vpack.c.bf16 %v1960, %v1958
    %v1991 = vpack.c.bf16 %v1988, %v1986
    %s1992 = scalar_lea.vmem %s10, 48
    %v1993 = vld [vmem:[%s1992] sm:$0xf]
    %v1994 = vld [vmem:[%s1992 + $0x4] sm:$0xf]
    %v1995 = vld [vmem:[%s1992 + $0x8] sm:$0xf]
    %v1996 = vld [vmem:[%s1992 + $0xc] sm:$0xf]
    %v2001 = vunpack.c.l.b16 %v1993
    %v2002 = vunpack.c.l.b16 %v1994
    %v2003 = vunpack.c.l.b16 %v1995
    %v2004 = vunpack.c.l.b16 %v1996
    %v2005 = vpack.c.b16 %v2002, %v2001
    %v2006 = vpack.c.b16 %v2004, %v2003
    %v2010 = vsel %vm348, %v1990, 0
    %v2013 = vsel %vm348, %v1991, 0
    %2015 = vmatpush.bf16.msra.mxu0 0
    %2016 = vmatpush.bf16.msra.mxu0 0
    %2017 = vmatpush.bf16.msra.mxu0 0
    %2018 = vmatpush.bf16.msra.mxu0 0
    %2019 = vmatpush.bf16.msra.mxu0 0
    %2020 = vmatpush.bf16.msra.mxu0 0
    %2021 = vmatpush.bf16.msra.mxu0 %v2006
    %2022 = vmatpush.bf16.msra.mxu0 %v2005
    %2023 = vmatmul.bf16.gmra.mxu0 %v2010
    %v2024 = vpop.f32.mrf.mxu0
    %v2025 = vadd.f32 0.0, %v2024
    %v2026 = vpop.f32.mrf.mxu0
    %v2027 = vadd.f32 0.0, %v2026
    %2028 = vmatmul.bf16.gmra.mxu0 %v2013
    %v2029 = vpop.f32.mrf.mxu0
    %v2030 = vadd.f32 0.0, %v2029
    %v2031 = vpop.f32.mrf.mxu0
    %v2032 = vadd.f32 0.0, %v2031
    %2033 = vdwg.mxu0
    %v2034 = vadd.f32 %v1539, %v2025
    %v2035 = vadd.f32 %v1540, %v2027
    %v2036 = vadd.f32 %v1541, %v2030
    %v2037 = vadd.f32 %v1542, %v2032
    %v2038 = vld [vmem:[%s11] sm:$0x1]
    %v2040 = vperm.slane %v2038, 0
    %v2042 = vadd.f32 %v2034, %v2040
    %v2043 = vadd.f32 %v2035, %v2040
    %v2044 = vadd.f32 %v2036, %v2040
    %v2045 = vadd.f32 %v2037, %v2040
    %2046 = vst [vmem:[#allocation2] sm:$0xff] %v2042
    %2047 = vst [vmem:[#allocation2 + $0x8] sm:$0xff] %v2043
    %2048 = vst [vmem:[#allocation2 + $0x10] sm:$0xff] %v2044
    %2049 = vst [vmem:[#allocation2 + $0x18] sm:$0xff] %v2045
    // Predicated region
    $region50: #{tpu_custom_call.1} parent=1 // pred_check
      _
    $region51: #{tpu_custom_call.1} parent=1 // pred_check_branch
      %2051 = sbr.rel (0) target = $region53
    $region52: #{tpu_custom_call.1} parent=1 // pred_region
      %2053 = vsyncadd [#allocation3], 0
      %s2054 = sshll.u32 [#allocation2], 4
      %s2055 = int_to_ptr.vmem [resolvable:$true] %s2054
      %s2056 = sshll.u32 %s12, 4
      %s2057 = int_to_ptr.hbm [resolvable:$true] %s2056
      %2062 = dma.vmem_to_hbm [thread:$0]  %s2055, 512, %s2057, [#allocation3], 128, 128, 8
    $region53: #{tpu_custom_call.1} parent=1 // pred_fallthru
      _
    // Predicated region
    $region54: #{tpu_custom_call.1} parent=1 // pred_check
      _
    $region55: #{tpu_custom_call.1} parent=1 // pred_check_branch
      %2064 = sbr.rel (0) target = $region57
    $region56: #{tpu_custom_call.1} parent=1 // pred_region
      %2066 = dma.done [#allocation3], 512
    $region57: #{tpu_custom_call.1} parent=1 // pred_fallthru
      _
    %2067 = vsyncpa [#allocation3], 1

</llo_original>
